<compile_context>
chip_gen: v7x
topology: tpu7x:2x2x1
jax: 0.10.0
libtpu: 0.0.40
codegen_flags: <defaults>
</compile_context>

<pallas_src>
import functools
import math

import jax
import jax.numpy as jnp
from jax.experimental import pallas as pl
from jax.experimental.pallas import tpu as pltpu

# ----------------------- configuration (config.*) ---------------------------
VOCAB = 100
T = 8            # token sequence length
D = 32           # transformer_encoder.dim
FFN = 64         # transformer encoder feed-forward dim
H = 16           # config.addressee_predictor.hidden_dim
ATTN = 32        # cross-attention projection dim
C_OUT = 8        # config.conv_pool.out_channels
K_SIZE = 3       # config.conv_pool.kernel_size
STRIDE = 1       # config.conv_pool.stride
PAD = 1          # config.conv_pool.padding
NUM_SPEAKERS = 4
N_OUT = NUM_SPEAKERS + 2
L_MEM = 5        # dialog memory length
DH = D + H       # transformer dim + addressee hidden dim = 48

OUT_ROWS = 8
OUT_LANES = 128

# ---- packed-weight slab column layouts (static, 128-lane-group aligned) -----
# w32: (D, 512) — everything consumed by a D(=32)-dim input
W32_QKV = (0, 96)          # encoder fused Wq|Wk|Wv   (Wq pre-scaled by 1/sqrt(D))
W32_WO = (128, 160)        # encoder attn out proj
W32_W1 = (256, 320)        # encoder FFN in
W32_CA1_WQ = (384, 416)    # cross-attn-1 Wq          (pre-scaled by 1/sqrt(ATTN))
W32_COLS = 512
# w48: (DH, 768) — everything consumed by a DH(=48)-dim input
W48_CA1_WKV = (0, 80)      # cross-attn-1 fused Wk|Wv
W48_CA2_WKV = (128, 208)   # cross-attn-2 fused Wk|Wv (adjacent group -> fused dot)
W48_KV_ALL = (0, 256)      # union of both K/V projections (single hoisted matmul)
W48_CA2_WQ = (256, 288)    # cross-attn-2 Wq          (pre-scaled by 1/sqrt(ATTN))
W48_CONV = (384, 392)      # conv_pool center tap (C_in=DH, C_out=8)
W48_TAIL = (512, 532)      # control_predictor_linear (4) | ai_addressee_hidden (16)
W48_AH = (640, 656)        # addressee_predictor_hidden (input zero-padded 40 -> 48)
W48_COLS = 768
# w64: (FFN, D)   — encoder FFN out
# w16: (H, 12)    — addressee / ai_addressee output heads (fused terminal matmul)
W16_AO = (0, N_OUT)
W16_AIO = (N_OUT, 2 * N_OUT)

# ---- bias / layernorm slab rows (each row zero-padded to 128 lanes) ---------
(B_ENC_QKV, B_ENC_O, B_G1, B_BE1, B_G2, B_BE2, B_ENC_1, B_ENC_2,
 B_CA1_Q, B_CA1_KV, B_CA2_Q, B_CA2_KV, B_CONV, B_AH, B_AO, B_CL, B_AIH,
 B_AIO) = range(18)
N_BIAS_ROWS = 18

VMEM_SPEC = pl.BlockSpec(memory_space=pltpu.MemorySpace.VMEM)


# --------------------------- shared forward math -----------------------------
# Used both inside the Pallas kernel (approx reciprocal) and by the pure-JAX
# reference (exact reciprocal), so kernel and reference cannot drift apart.
def _forward_math(tok, mem, w32, w48, w64, w16, bias, *, recip):
    f32 = jnp.float32

    def brow(r, n):
        return bias[r:r + 1, :n]

    def col(slab, rng):
        return slab[:, rng[0]:rng[1]]

    def layernorm(v, g, b):
        mu = jnp.mean(v, axis=-1, keepdims=True)
        var = jnp.mean((v - mu) ** 2, axis=-1, keepdims=True)
        return (v - mu) * jax.lax.rsqrt(var + 1e-5) * g + b

    def softmax(s):
        m = jnp.max(s, axis=-1, keepdims=True)
        e = jnp.exp(s - m)
        return e * recip(jnp.sum(e, axis=-1, keepdims=True))

    def sdpa(qp, kp, vp):
        # single-head SDPA; 1/sqrt(d) already folded into the Q weights.
        s = jax.lax.dot_general(qp, kp, (((1,), (1,)), ((), ())),
                                preferred_element_type=f32)
        return jnp.dot(softmax(s), vp, preferred_element_type=f32)

    # ---- hoisted: both cross-attention K/V projections of the dialog memory
    # in ONE matmul, computed up front so it overlaps with the encoder chain.
    if mem is not None:
        kv_all = jnp.dot(mem, col(w48, W48_KV_ALL), preferred_element_type=f32)
        kv1 = (kv_all[:, W48_CA1_WKV[0]:W48_CA1_WKV[1]]
               + brow(B_CA1_KV, ATTN + DH))
        kv2 = (kv_all[:, W48_CA2_WKV[0]:W48_CA2_WKV[1]]
               + brow(B_CA2_KV, ATTN + DH))
        k1, v1 = kv1[:, :ATTN], kv1[:, ATTN:]
        k2, v2 = kv2[:, :ATTN], kv2[:, ATTN:]

    # ---- transformer encoder layer (pre-LN, single head); CLS = row 0 ----
    a_in = layernorm(tok, brow(B_G1, D), brow(B_BE1, D))
    qkv = jnp.dot(a_in, col(w32, W32_QKV),
                  preferred_element_type=f32) + brow(B_ENC_QKV, 3 * D)
    q, k, v = qkv[:, :D], qkv[:, D:2 * D], qkv[:, 2 * D:]
    ctx = sdpa(q, k, v)
    ctx = jnp.dot(ctx, col(w32, W32_WO),
                  preferred_element_type=f32) + brow(B_ENC_O, D)
    h = tok + ctx
    f_in = layernorm(h, brow(B_G2, D), brow(B_BE2, D))
    f = jnp.maximum(jnp.dot(f_in, col(w32, W32_W1),
                            preferred_element_type=f32) + brow(B_ENC_1, FFN), 0.0)
    f = jnp.dot(f, w64, preferred_element_type=f32) + brow(B_ENC_2, D)
    h = h + f
    cls = h[0:1, :]                                                    # (1, D)

    # ---- cross-attention 1 (query = cls) ----
    if mem is not None:
        q1 = jnp.dot(cls, col(w32, W32_CA1_WQ),
                     preferred_element_type=f32) + brow(B_CA1_Q, ATTN)
        out_dialog = sdpa(q1, k1, v1)                                  # (1, DH)
    else:
        out_dialog = jnp.concatenate([cls, jnp.zeros((1, H), f32)], axis=-1)

    # Conv1d(L=1, K=3, stride=1, pad=1) + adaptive_avg_pool1d(1): the two
    # padded positions are exact zeros and l_out == 1, so this is exactly
    # out_dialog @ conv_w[center] + conv_b.
    conv_out = jnp.dot(out_dialog, col(w48, W48_CONV),
                       preferred_element_type=f32) + brow(B_CONV, C_OUT)

    # addressee head: input is concat(conv_out, cls) (40 dims), zero-padded to
    # 48 so it can use the DH-row weight slab (padded weight rows are zero).
    feat = jnp.concatenate(
        [conv_out, cls, jnp.zeros((1, DH - C_OUT - D), f32)], axis=-1)
    addressee_emb = jnp.maximum(
        jnp.dot(feat, col(w48, W48_AH), preferred_element_type=f32)
        + brow(B_AH, H), 0.0)

    # ---- cross-attention 2 (query = concat(cls, addressee_emb)) ----
    if mem is not None:
        q2c = jnp.concatenate([cls, addressee_emb], axis=-1)           # (1, DH)
        q2 = jnp.dot(q2c, col(w48, W48_CA2_WQ),
                     preferred_element_type=f32) + brow(B_CA2_Q, ATTN)
        pooled = sdpa(q2, k2, v2)                                      # (1, DH)
    else:
        pooled = out_dialog
    # adaptive_avg_pool1d over a length-1 sequence is the identity.

    # ---- fused tail: control_predictor_linear + ai_addressee_hidden ----
    tail = jnp.dot(pooled, col(w48, W48_TAIL), preferred_element_type=f32)
    control_token = tail[:, :4] + brow(B_CL, 4)
    ai_addressee_emb = jnp.maximum(tail[:, 4:4 + H] + brow(B_AIH, H), 0.0)

    # ---- fused terminal output heads (both 16 -> 6 dots in one matmul) ----
    emb2 = jnp.concatenate([addressee_emb, ai_addressee_emb], axis=0)   # (2, H)
    heads = jnp.dot(emb2, w16, preferred_element_type=f32)              # (2, 12)
    addressee = heads[0:1, W16_AO[0]:W16_AO[1]] + brow(B_AO, N_OUT)
    ai_addressee = heads[1:2, W16_AIO[0]:W16_AIO[1]] + brow(B_AIO, N_OUT)

    return (addressee, addressee_emb, ai_addressee, ai_addressee_emb,
            control_token, cls)


# --------------------------- fused Pallas kernel -----------------------------
def _fused_kernel(tok_ref,                    # SMEM (T,) int32, scalar-prefetched
                  mem_ref, emb_ref, pos_ref,
                  w32_ref, w48_ref, w64_ref, w16_ref, bias_ref,
                  out_ref, *, has_memory):
    f32 = jnp.float32

    # Embedding lookup: T direct row gathers driven by SMEM scalar indices
    # (no one-hot / MXU contraction over the vocab dim).
    rows = [emb_ref[pl.ds(tok_ref[i], 1), :] for i in range(T)]
    tok = jnp.concatenate(rows, axis=0) + pos_ref[...]

    mem = mem_ref[...] if has_memory else None
    outs = _forward_math(tok, mem, w32_ref[...], w48_ref[...], w64_ref[...],
                         w16_ref[...], bias_ref[...],
                         recip=lambda x: pl.reciprocal(x, approx=True))
    addressee, addressee_emb, ai_addressee, ai_addressee_emb, control_tok, cls = outs

    # Pack all six outputs into one lane-dense (8, 128) slab, one unmasked store.
    def row(vec):
        return jnp.concatenate(
            [vec, jnp.zeros((1, OUT_LANES - vec.shape[-1]), f32)], axis=-1)

    out_ref[...] = jnp.concatenate(
        [row(addressee), row(addressee_emb), row(ai_addressee),
         row(ai_addressee_emb), row(control_tok), row(cls),
         jnp.zeros((OUT_ROWS - 6, OUT_LANES), f32)], axis=0)


# --------------------------- parameters --------------------------------------
def init_params(key):
    keys = iter(jax.random.split(key, 32))

    def nrm(shape, scale):
        return scale * jax.random.normal(next(keys), shape, jnp.float32)

    def lin_w(d_in, d_out):
        return nrm((d_in, d_out), 1.0 / math.sqrt(d_in))

    emb = nrm((VOCAB, D), 0.02)
    pos = nrm((T, D), 0.02)

    # transformer encoder (attention scale folded into Wq)
    enc_wq = lin_w(D, D) / math.sqrt(D)
    enc_wk = lin_w(D, D)
    enc_wv = lin_w(D, D)
    enc_wo = lin_w(D, D)
    enc_w1 = lin_w(D, FFN)
    enc_w2 = lin_w(FFN, D)

    # cross attentions (scale folded into Wq)
    ca1_wq = lin_w(D, ATTN) / math.sqrt(ATTN)
    ca1_wk = lin_w(DH, ATTN)
    ca1_wv = lin_w(DH, DH)
    ca2_wq = lin_w(DH, ATTN) / math.sqrt(ATTN)
    ca2_wk = lin_w(DH, ATTN)
    ca2_wv = lin_w(DH, DH)

    # conv_pool weight stored (K, C_in, C_out); only the center tap reaches
    # non-zero input when L=1, pad=1, so only conv_w[PAD] is packed.
    conv_w = nrm((K_SIZE, DH, C_OUT), 1.0 / math.sqrt(DH * K_SIZE))

    ah_w = lin_w(C_OUT + D, H)
    ao_w = lin_w(H, N_OUT)
    cl_w = lin_w(DH, 4)
    aih_w = lin_w(DH, H)
    aio_w = lin_w(H, N_OUT)

    # ---- pack weight slabs (every segment starts on a 128-lane boundary) ----
    def place(slab, start, w):
        return slab.at[:, start:start + w.shape[1]].set(w)

    w32 = jnp.zeros((D, W32_COLS), jnp.float32)
    w32 = place(w32, W32_QKV[0], jnp.concatenate([enc_wq, enc_wk, enc_wv], axis=1))
    w32 = place(w32, W32_WO[0], enc_wo)
    w32 = place(w32, W32_W1[0], enc_w1)
    w32 = place(w32, W32_CA1_WQ[0], ca1_wq)

    ah_w_pad = jnp.concatenate(
        [ah_w, jnp.zeros((DH - (C_OUT + D), H), jnp.float32)], axis=0)
    w48 = jnp.zeros((DH, W48_COLS), jnp.float32)
    w48 = place(w48, W48_CA1_WKV[0], jnp.concatenate([ca1_wk, ca1_wv], axis=1))
    w48 = place(w48, W48_CA2_WKV[0], jnp.concatenate([ca2_wk, ca2_wv], axis=1))
    w48 = place(w48, W48_CA2_WQ[0], ca2_wq)
    w48 = place(w48, W48_CONV[0], conv_w[PAD])
    w48 = place(w48, W48_TAIL[0], jnp.concatenate([cl_w, aih_w], axis=1))
    w48 = place(w48, W48_AH[0], ah_w_pad)

    w64 = enc_w2                                                 # (64, 32)
    w16 = jnp.concatenate([ao_w, aio_w], axis=1)                 # (16, 12)
    assert w32.shape == (D, W32_COLS) and w48.shape == (DH, W48_COLS)

    # ---- pack all bias / layernorm vectors into one (18, 128) slab ----
    rows = [None] * N_BIAS_ROWS
    rows[B_ENC_QKV] = jnp.zeros((3 * D,))
    rows[B_ENC_O] = jnp.zeros((D,))
    rows[B_G1] = jnp.ones((D,))
    rows[B_BE1] = jnp.zeros((D,))
    rows[B_G2] = jnp.ones((D,))
    rows[B_BE2] = jnp.zeros((D,))
    rows[B_ENC_1] = jnp.zeros((FFN,))
    rows[B_ENC_2] = jnp.zeros((D,))
    rows[B_CA1_Q] = jnp.zeros((ATTN,))
    rows[B_CA1_KV] = jnp.zeros((ATTN + DH,))
    rows[B_CA2_Q] = jnp.zeros((ATTN,))
    rows[B_CA2_KV] = jnp.zeros((ATTN + DH,))
    rows[B_CONV] = jnp.zeros((C_OUT,))
    rows[B_AH] = jnp.zeros((H,))
    rows[B_AO] = jnp.zeros((N_OUT,))
    rows[B_CL] = jnp.zeros((4,))
    rows[B_AIH] = jnp.zeros((H,))
    rows[B_AIO] = jnp.zeros((N_OUT,))
    bias = jnp.zeros((N_BIAS_ROWS, OUT_LANES), jnp.float32)
    for i, r in enumerate(rows):
        bias = bias.at[i, : r.shape[0]].set(r.astype(jnp.float32))

    return {"emb": emb, "pos": pos, "w32": w32, "w48": w48, "w64": w64,
            "w16": w16, "bias": bias}


# --------------------------- forward pass (host wrapper) ---------------------
def control_module_forward(x_tokens, dialog_memory, params):
    """x_tokens: (1, T) int32 ; dialog_memory: (L, D+H) float32 (possibly empty)."""
    has_memory = dialog_memory.shape[0] > 0          # trace-time (shape-based)
    mem = dialog_memory if has_memory else jnp.zeros((1, DH), jnp.float32)
    tok_ids = x_tokens.reshape(-1).astype(jnp.int32)

    grid_spec = pltpu.PrefetchScalarGridSpec(
        num_scalar_prefetch=1,
        grid=(1,),
        in_specs=[VMEM_SPEC] * 8,
        out_specs=VMEM_SPEC,
    )
    cost = pl.CostEstimate(flops=350_000, transcendentals=128,
                           bytes_accessed=260_000)
    slab = pl.pallas_call(
        functools.partial(_fused_kernel, has_memory=has_memory),
        out_shape=jax.ShapeDtypeStruct((OUT_ROWS, OUT_LANES), jnp.float32),
        grid_spec=grid_spec,
        compiler_params=pltpu.CompilerParams(dimension_semantics=("arbitrary",)),
        cost_estimate=cost,
    )(tok_ids, mem, params["emb"], params["pos"], params["w32"], params["w48"],
      params["w64"], params["w16"], params["bias"])

    addressee = slab[0:1, :N_OUT]
    addressee_emb = slab[1:2, :H]
    ai_addressee = slab[2:3, :N_OUT]
    ai_addressee_emb = slab[3:4, :H]
    control_token = slab[4:5, :4]
    cls = slab[5:6, :D]
    return addressee, addressee_emb, ai_addressee, ai_addressee_emb, control_token, cls


# --------------------------- pure-JAX reference -------------------------------
def reference_forward(x_tokens, dialog_memory, p):
    tok = p["emb"][x_tokens.reshape(-1)] + p["pos"]
    mem = dialog_memory if dialog_memory.shape[0] > 0 else None
    return _forward_math(tok, mem, p["w32"], p["w48"], p["w64"], p["w16"],
                         p["bias"], recip=lambda x: 1.0 / x)


# ------------------------------ main ------------------------------------------
if __name__ == "__main__":
    key = jax.random.PRNGKey(0)
    pkey, xkey, mkey = jax.random.split(key, 3)

    params = init_params(pkey)
    x = jax.random.randint(xkey, (1, T), 0, VOCAB, dtype=jnp.int32)
    dialog_memory = jax.random.normal(mkey, (L_MEM, DH), jnp.float32)

    forward = jax.jit(control_module_forward)
    outs = jax.block_until_ready(forward(x, dialog_memory, params))
    refs = reference_forward(x, dialog_memory, params)

    addressee, addressee_emb, ai_addressee, ai_addressee_emb, control_token, cls = outs
    assert addressee.shape == (1, N_OUT)
    assert addressee_emb.shape == (1, H)
    assert ai_addressee.shape == (1, N_OUT)
    assert ai_addressee_emb.shape == (1, H)
    assert control_token.shape == (1, 4)
    assert cls.shape == (1, D)
    for o, r in zip(outs, refs):
        assert o.shape == r.shape
        assert bool(jnp.all(jnp.isfinite(o)))
        assert bool(jnp.allclose(o, r, atol=1e-2, rtol=1e-2)), \
            float(jnp.max(jnp.abs(o - r)))

    print("KERNEL_OK")
</pallas_src>

<mosaic_0001>
module attributes {stable_mosaic.version = 11 : i64} {
  func.func @_fused_kernel(%arg0: i32, %arg1: memref<8xi32, #tpu.memory_space<smem>>, %arg2: memref<5x48xf32, #tpu.memory_space<vmem>>, %arg3: memref<100x32xf32, #tpu.memory_space<vmem>>, %arg4: memref<8x32xf32, #tpu.memory_space<vmem>>, %arg5: memref<32x512xf32, #tpu.memory_space<vmem>>, %arg6: memref<48x768xf32, #tpu.memory_space<vmem>>, %arg7: memref<64x32xf32, #tpu.memory_space<vmem>>, %arg8: memref<16x12xf32, #tpu.memory_space<vmem>>, %arg9: memref<18x128xf32, #tpu.memory_space<vmem>>, %arg10: memref<8x128xf32, #tpu.memory_space<vmem>>) attributes {dimension_semantics = [#tpu.dimension_semantics<arbitrary>], iteration_bounds = array<i64: 1>, scalar_prefetch = 1 : i64, scratch_operands = 0 : i64, tpu.core_type = #tpu.core_type<tc>, window_params = [{pipeline_mode = #tpu.pipeline_mode<synchronous>, transform_indices = @transform_0, window_bounds = array<i64: 5, 48>}, {pipeline_mode = #tpu.pipeline_mode<synchronous>, transform_indices = @transform_1, window_bounds = array<i64: 100, 32>}, {pipeline_mode = #tpu.pipeline_mode<synchronous>, transform_indices = @transform_2, window_bounds = array<i64: 8, 32>}, {pipeline_mode = #tpu.pipeline_mode<synchronous>, transform_indices = @transform_3, window_bounds = array<i64: 32, 512>}, {pipeline_mode = #tpu.pipeline_mode<synchronous>, transform_indices = @transform_4, window_bounds = array<i64: 48, 768>}, {pipeline_mode = #tpu.pipeline_mode<synchronous>, transform_indices = @transform_5, window_bounds = array<i64: 64, 32>}, {pipeline_mode = #tpu.pipeline_mode<synchronous>, transform_indices = @transform_6, window_bounds = array<i64: 16, 12>}, {pipeline_mode = #tpu.pipeline_mode<synchronous>, transform_indices = @transform_7, window_bounds = array<i64: 18, 128>}, {pipeline_mode = #tpu.pipeline_mode<synchronous>, transform_indices = @transform_8, window_bounds = array<i64: 8, 128>}]} {
    %c0 = arith.constant 0 : index
    %0 = memref.load %arg1[%c0] : memref<8xi32, #tpu.memory_space<smem>>
    %1 = arith.index_cast %0 : i32 to index
    %c0_0 = arith.constant 0 : index
    %2 = vector.load %arg3[%1, %c0_0] : memref<100x32xf32, #tpu.memory_space<vmem>>, vector<1x32xf32>
    %c1 = arith.constant 1 : index
    %3 = memref.load %arg1[%c1] : memref<8xi32, #tpu.memory_space<smem>>
    %4 = arith.index_cast %3 : i32 to index
    %c0_1 = arith.constant 0 : index
    %5 = vector.load %arg3[%4, %c0_1] : memref<100x32xf32, #tpu.memory_space<vmem>>, vector<1x32xf32>
    %c2 = arith.constant 2 : index
    %6 = memref.load %arg1[%c2] : memref<8xi32, #tpu.memory_space<smem>>
    %7 = arith.index_cast %6 : i32 to index
    %c0_2 = arith.constant 0 : index
    %8 = vector.load %arg3[%7, %c0_2] : memref<100x32xf32, #tpu.memory_space<vmem>>, vector<1x32xf32>
    %c3 = arith.constant 3 : index
    %9 = memref.load %arg1[%c3] : memref<8xi32, #tpu.memory_space<smem>>
    %10 = arith.index_cast %9 : i32 to index
    %c0_3 = arith.constant 0 : index
    %11 = vector.load %arg3[%10, %c0_3] : memref<100x32xf32, #tpu.memory_space<vmem>>, vector<1x32xf32>
    %c4 = arith.constant 4 : index
    %12 = memref.load %arg1[%c4] : memref<8xi32, #tpu.memory_space<smem>>
    %13 = arith.index_cast %12 : i32 to index
    %c0_4 = arith.constant 0 : index
    %14 = vector.load %arg3[%13, %c0_4] : memref<100x32xf32, #tpu.memory_space<vmem>>, vector<1x32xf32>
    %c5 = arith.constant 5 : index
    %15 = memref.load %arg1[%c5] : memref<8xi32, #tpu.memory_space<smem>>
    %16 = arith.index_cast %15 : i32 to index
    %c0_5 = arith.constant 0 : index
    %17 = vector.load %arg3[%16, %c0_5] : memref<100x32xf32, #tpu.memory_space<vmem>>, vector<1x32xf32>
    %c6 = arith.constant 6 : index
    %18 = memref.load %arg1[%c6] : memref<8xi32, #tpu.memory_space<smem>>
    %19 = arith.index_cast %18 : i32 to index
    %c0_6 = arith.constant 0 : index
    %20 = vector.load %arg3[%19, %c0_6] : memref<100x32xf32, #tpu.memory_space<vmem>>, vector<1x32xf32>
    %c7 = arith.constant 7 : index
    %21 = memref.load %arg1[%c7] : memref<8xi32, #tpu.memory_space<smem>>
    %22 = arith.index_cast %21 : i32 to index
    %c0_7 = arith.constant 0 : index
    %23 = vector.load %arg3[%22, %c0_7] : memref<100x32xf32, #tpu.memory_space<vmem>>, vector<1x32xf32>
    %24 = tpu.concatenate %2, %5, %8, %11, %14, %17, %20, %23 in 0 : vector<1x32xf32>, vector<1x32xf32>, vector<1x32xf32>, vector<1x32xf32>, vector<1x32xf32>, vector<1x32xf32>, vector<1x32xf32>, vector<1x32xf32> -> vector<8x32xf32>
    %c0_8 = arith.constant 0 : index
    %c0_9 = arith.constant 0 : index
    %25 = vector.load %arg4[%c0_8, %c0_9] : memref<8x32xf32, #tpu.memory_space<vmem>>, vector<8x32xf32>
    %26 = arith.addf %24, %25 : vector<8x32xf32>
    %c0_10 = arith.constant 0 : index
    %c0_11 = arith.constant 0 : index
    %27 = vector.load %arg2[%c0_10, %c0_11] : memref<5x48xf32, #tpu.memory_space<vmem>>, vector<5x48xf32>
    %c0_12 = arith.constant 0 : index
    %c0_13 = arith.constant 0 : index
    %28 = vector.load %arg5[%c0_12, %c0_13] : memref<32x512xf32, #tpu.memory_space<vmem>>, vector<32x512xf32>
    %c0_14 = arith.constant 0 : index
    %c0_15 = arith.constant 0 : index
    %29 = vector.load %arg6[%c0_14, %c0_15] : memref<48x768xf32, #tpu.memory_space<vmem>>, vector<48x768xf32>
    %c0_16 = arith.constant 0 : index
    %c0_17 = arith.constant 0 : index
    %30 = vector.load %arg7[%c0_16, %c0_17] : memref<64x32xf32, #tpu.memory_space<vmem>>, vector<64x32xf32>
    %c0_18 = arith.constant 0 : index
    %c0_19 = arith.constant 0 : index
    %31 = vector.load %arg8[%c0_18, %c0_19] : memref<16x12xf32, #tpu.memory_space<vmem>>, vector<16x12xf32>
    %c0_20 = arith.constant 0 : index
    %c0_21 = arith.constant 0 : index
    %32 = vector.load %arg9[%c0_20, %c0_21] : memref<18x128xf32, #tpu.memory_space<vmem>>, vector<18x128xf32>
    %33 = vector.extract_strided_slice %29 {offsets = [0, 0], sizes = [48, 256], strides = [1, 1]} : vector<48x768xf32> to vector<48x256xf32>
    %cst = arith.constant dense<0.000000e+00> : vector<5x256xf32>
    %34 = tpu.matmul %27, %33, %cst {dimension_numbers = #tpu.dot_dimension_numbers<[1], [0], [0], [1], [0, 0, 1, 1], [], []>} : vector<5x48xf32>, vector<48x256xf32>, vector<5x256xf32> -> vector<5x256xf32>
    %35 = vector.extract_strided_slice %34 {offsets = [0, 0], sizes = [5, 80], strides = [1, 1]} : vector<5x256xf32> to vector<5x80xf32>
    %36 = vector.extract_strided_slice %32 {offsets = [9, 0], sizes = [1, 80], strides = [1, 1]} : vector<18x128xf32> to vector<1x80xf32>
    %37 = vector.broadcast %36 : vector<1x80xf32> to vector<5x80xf32>
    %38 = arith.addf %35, %37 : vector<5x80xf32>
    %39 = vector.extract_strided_slice %34 {offsets = [0, 128], sizes = [5, 80], strides = [1, 1]} : vector<5x256xf32> to vector<5x80xf32>
    %40 = vector.extract_strided_slice %32 {offsets = [11, 0], sizes = [1, 80], strides = [1, 1]} : vector<18x128xf32> to vector<1x80xf32>
    %41 = vector.broadcast %40 : vector<1x80xf32> to vector<5x80xf32>
    %42 = arith.addf %39, %41 : vector<5x80xf32>
    %43 = vector.extract_strided_slice %38 {offsets = [0, 0], sizes = [5, 32], strides = [1, 1]} : vector<5x80xf32> to vector<5x32xf32>
    %44 = vector.extract_strided_slice %38 {offsets = [0, 32], sizes = [5, 48], strides = [1, 1]} : vector<5x80xf32> to vector<5x48xf32>
    %45 = vector.extract_strided_slice %42 {offsets = [0, 0], sizes = [5, 32], strides = [1, 1]} : vector<5x80xf32> to vector<5x32xf32>
    %46 = vector.extract_strided_slice %42 {offsets = [0, 32], sizes = [5, 48], strides = [1, 1]} : vector<5x80xf32> to vector<5x48xf32>
    %47 = vector.extract_strided_slice %32 {offsets = [2, 0], sizes = [1, 32], strides = [1, 1]} : vector<18x128xf32> to vector<1x32xf32>
    %48 = vector.extract_strided_slice %32 {offsets = [3, 0], sizes = [1, 32], strides = [1, 1]} : vector<18x128xf32> to vector<1x32xf32>
    %cst_22 = arith.constant dense<0.000000e+00> : vector<8xf32>
    %49 = vector.multi_reduction <add>, %26, %cst_22 [1] : vector<8x32xf32> to vector<8xf32>
    %50 = vector.shape_cast %49 : vector<8xf32> to vector<8x1xf32>
    %cst_23 = arith.constant 3.200000e+01 : f32
    %51 = vector.broadcast %cst_23 : f32 to vector<8x1xf32>
    %52 = arith.divf %50, %51 : vector<8x1xf32>
    %53 = vector.broadcast %52 : vector<8x1xf32> to vector<8x32xf32>
    %54 = arith.subf %26, %53 : vector<8x32xf32>
    %55 = arith.mulf %54, %54 : vector<8x32xf32>
    %cst_24 = arith.constant dense<0.000000e+00> : vector<8xf32>
    %56 = vector.multi_reduction <add>, %55, %cst_24 [1] : vector<8x32xf32> to vector<8xf32>
    %57 = vector.shape_cast %56 : vector<8xf32> to vector<8x1xf32>
    %cst_25 = arith.constant 3.200000e+01 : f32
    %58 = vector.broadcast %cst_25 : f32 to vector<8x1xf32>
    %59 = arith.divf %57, %58 : vector<8x1xf32>
    %60 = vector.broadcast %52 : vector<8x1xf32> to vector<8x32xf32>
    %61 = arith.subf %26, %60 : vector<8x32xf32>
    %cst_26 = arith.constant 9.99999974E-6 : f32
    %62 = vector.broadcast %cst_26 : f32 to vector<8x1xf32>
    %63 = arith.addf %59, %62 : vector<8x1xf32>
    %64 = math.rsqrt %63 : vector<8x1xf32>
    %65 = vector.broadcast %64 : vector<8x1xf32> to vector<8x32xf32>
    %66 = arith.mulf %61, %65 : vector<8x32xf32>
    %67 = vector.broadcast %47 : vector<1x32xf32> to vector<8x32xf32>
    %68 = arith.mulf %66, %67 : vector<8x32xf32>
    %69 = vector.broadcast %48 : vector<1x32xf32> to vector<8x32xf32>
    %70 = arith.addf %68, %69 : vector<8x32xf32>
    %71 = vector.extract_strided_slice %28 {offsets = [0, 0], sizes = [32, 96], strides = [1, 1]} : vector<32x512xf32> to vector<32x96xf32>
    %cst_27 = arith.constant dense<0.000000e+00> : vector<8x96xf32>
    %72 = tpu.matmul %70, %71, %cst_27 {dimension_numbers = #tpu.dot_dimension_numbers<[1], [0], [0], [1], [0, 0, 1, 1], [], []>} : vector<8x32xf32>, vector<32x96xf32>, vector<8x96xf32> -> vector<8x96xf32>
    %73 = vector.extract_strided_slice %32 {offsets = [0, 0], sizes = [1, 96], strides = [1, 1]} : vector<18x128xf32> to vector<1x96xf32>
    %74 = vector.broadcast %73 : vector<1x96xf32> to vector<8x96xf32>
    %75 = arith.addf %72, %74 : vector<8x96xf32>
    %76 = vector.extract_strided_slice %75 {offsets = [0, 0], sizes = [8, 32], strides = [1, 1]} : vector<8x96xf32> to vector<8x32xf32>
    %77 = vector.extract_strided_slice %75 {offsets = [0, 32], sizes = [8, 32], strides = [1, 1]} : vector<8x96xf32> to vector<8x32xf32>
    %78 = vector.extract_strided_slice %75 {offsets = [0, 64], sizes = [8, 32], strides = [1, 1]} : vector<8x96xf32> to vector<8x32xf32>
    %cst_28 = arith.constant dense<0.000000e+00> : vector<8x8xf32>
    %79 = tpu.matmul %76, %77, %cst_28 {dimension_numbers = #tpu.dot_dimension_numbers<[1], [1], [0], [0], [0, 0, 1, 0], [], []>} : vector<8x32xf32>, vector<8x32xf32>, vector<8x8xf32> -> vector<8x8xf32>
    %cst_29 = arith.constant dense<0xFF800000> : vector<8xf32>
    %80 = vector.multi_reduction <maximumf>, %79, %cst_29 [1] : vector<8x8xf32> to vector<8xf32>
    %81 = vector.shape_cast %80 : vector<8xf32> to vector<8x1xf32>
    %82 = vector.broadcast %81 : vector<8x1xf32> to vector<8x8xf32>
    %83 = arith.subf %79, %82 : vector<8x8xf32>
    %84 = math.exp %83 : vector<8x8xf32>
    %cst_30 = arith.constant dense<0.000000e+00> : vector<8xf32>
    %85 = vector.multi_reduction <add>, %84, %cst_30 [1] : vector<8x8xf32> to vector<8xf32>
    %86 = vector.shape_cast %85 : vector<8xf32> to vector<8x1xf32>
    %87 = tpu.reciprocal %86 {approx = true} : vector<8x1xf32> -> vector<8x1xf32>
    %88 = vector.broadcast %87 : vector<8x1xf32> to vector<8x8xf32>
    %89 = arith.mulf %84, %88 : vector<8x8xf32>
    %cst_31 = arith.constant dense<0.000000e+00> : vector<8x32xf32>
    %90 = tpu.matmul %89, %78, %cst_31 {dimension_numbers = #tpu.dot_dimension_numbers<[1], [0], [0], [1], [0, 0, 1, 1], [], []>} : vector<8x8xf32>, vector<8x32xf32>, vector<8x32xf32> -> vector<8x32xf32>
    %91 = vector.extract_strided_slice %28 {offsets = [0, 128], sizes = [32, 32], strides = [1, 1]} : vector<32x512xf32> to vector<32x32xf32>
    %cst_32 = arith.constant dense<0.000000e+00> : vector<8x32xf32>
    %92 = tpu.matmul %90, %91, %cst_32 {dimension_numbers = #tpu.dot_dimension_numbers<[1], [0], [0], [1], [0, 0, 1, 1], [], []>} : vector<8x32xf32>, vector<32x32xf32>, vector<8x32xf32> -> vector<8x32xf32>
    %93 = vector.extract_strided_slice %32 {offsets = [1, 0], sizes = [1, 32], strides = [1, 1]} : vector<18x128xf32> to vector<1x32xf32>
    %94 = vector.broadcast %93 : vector<1x32xf32> to vector<8x32xf32>
    %95 = arith.addf %92, %94 : vector<8x32xf32>
    %96 = arith.addf %26, %95 : vector<8x32xf32>
    %97 = vector.extract_strided_slice %32 {offsets = [4, 0], sizes = [1, 32], strides = [1, 1]} : vector<18x128xf32> to vector<1x32xf32>
    %98 = vector.extract_strided_slice %32 {offsets = [5, 0], sizes = [1, 32], strides = [1, 1]} : vector<18x128xf32> to vector<1x32xf32>
    %cst_33 = arith.constant dense<0.000000e+00> : vector<8xf32>
    %99 = vector.multi_reduction <add>, %96, %cst_33 [1] : vector<8x32xf32> to vector<8xf32>
    %100 = vector.shape_cast %99 : vector<8xf32> to vector<8x1xf32>
    %cst_34 = arith.constant 3.200000e+01 : f32
    %101 = vector.broadcast %cst_34 : f32 to vector<8x1xf32>
    %102 = arith.divf %100, %101 : vector<8x1xf32>
    %103 = vector.broadcast %102 : vector<8x1xf32> to vector<8x32xf32>
    %104 = arith.subf %96, %103 : vector<8x32xf32>
    %105 = arith.mulf %104, %104 : vector<8x32xf32>
    %cst_35 = arith.constant dense<0.000000e+00> : vector<8xf32>
    %106 = vector.multi_reduction <add>, %105, %cst_35 [1] : vector<8x32xf32> to vector<8xf32>
    %107 = vector.shape_cast %106 : vector<8xf32> to vector<8x1xf32>
    %cst_36 = arith.constant 3.200000e+01 : f32
    %108 = vector.broadcast %cst_36 : f32 to vector<8x1xf32>
    %109 = arith.divf %107, %108 : vector<8x1xf32>
    %110 = vector.broadcast %102 : vector<8x1xf32> to vector<8x32xf32>
    %111 = arith.subf %96, %110 : vector<8x32xf32>
    %cst_37 = arith.constant 9.99999974E-6 : f32
    %112 = vector.broadcast %cst_37 : f32 to vector<8x1xf32>
    %113 = arith.addf %109, %112 : vector<8x1xf32>
    %114 = math.rsqrt %113 : vector<8x1xf32>
    %115 = vector.broadcast %114 : vector<8x1xf32> to vector<8x32xf32>
    %116 = arith.mulf %111, %115 : vector<8x32xf32>
    %117 = vector.broadcast %97 : vector<1x32xf32> to vector<8x32xf32>
    %118 = arith.mulf %116, %117 : vector<8x32xf32>
    %119 = vector.broadcast %98 : vector<1x32xf32> to vector<8x32xf32>
    %120 = arith.addf %118, %119 : vector<8x32xf32>
    %121 = vector.extract_strided_slice %28 {offsets = [0, 256], sizes = [32, 64], strides = [1, 1]} : vector<32x512xf32> to vector<32x64xf32>
    %cst_38 = arith.constant dense<0.000000e+00> : vector<8x64xf32>
    %122 = tpu.matmul %120, %121, %cst_38 {dimension_numbers = #tpu.dot_dimension_numbers<[1], [0], [0], [1], [0, 0, 1, 1], [], []>} : vector<8x32xf32>, vector<32x64xf32>, vector<8x64xf32> -> vector<8x64xf32>
    %123 = vector.extract_strided_slice %32 {offsets = [6, 0], sizes = [1, 64], strides = [1, 1]} : vector<18x128xf32> to vector<1x64xf32>
    %124 = vector.broadcast %123 : vector<1x64xf32> to vector<8x64xf32>
    %125 = arith.addf %122, %124 : vector<8x64xf32>
    %cst_39 = arith.constant 0.000000e+00 : f32
    %126 = vector.broadcast %cst_39 : f32 to vector<8x64xf32>
    %127 = arith.maximumf %125, %126 : vector<8x64xf32>
    %cst_40 = arith.constant dense<0.000000e+00> : vector<8x32xf32>
    %128 = tpu.matmul %127, %30, %cst_40 {dimension_numbers = #tpu.dot_dimension_numbers<[1], [0], [0], [1], [0, 0, 1, 1], [], []>} : vector<8x64xf32>, vector<64x32xf32>, vector<8x32xf32> -> vector<8x32xf32>
    %129 = vector.extract_strided_slice %32 {offsets = [7, 0], sizes = [1, 32], strides = [1, 1]} : vector<18x128xf32> to vector<1x32xf32>
    %130 = vector.broadcast %129 : vector<1x32xf32> to vector<8x32xf32>
    %131 = arith.addf %128, %130 : vector<8x32xf32>
    %132 = arith.addf %96, %131 : vector<8x32xf32>
    %133 = vector.extract_strided_slice %132 {offsets = [0, 0], sizes = [1, 32], strides = [1, 1]} : vector<8x32xf32> to vector<1x32xf32>
    %134 = vector.extract_strided_slice %28 {offsets = [0, 384], sizes = [32, 32], strides = [1, 1]} : vector<32x512xf32> to vector<32x32xf32>
    %cst_41 = arith.constant dense<0.000000e+00> : vector<1x32xf32>
    %135 = tpu.matmul %133, %134, %cst_41 {dimension_numbers = #tpu.dot_dimension_numbers<[1], [0], [0], [1], [0, 0, 1, 1], [], []>} : vector<1x32xf32>, vector<32x32xf32>, vector<1x32xf32> -> vector<1x32xf32>
    %136 = vector.extract_strided_slice %32 {offsets = [8, 0], sizes = [1, 32], strides = [1, 1]} : vector<18x128xf32> to vector<1x32xf32>
    %137 = arith.addf %135, %136 : vector<1x32xf32>
    %cst_42 = arith.constant dense<0.000000e+00> : vector<1x5xf32>
    %138 = tpu.matmul %137, %43, %cst_42 {dimension_numbers = #tpu.dot_dimension_numbers<[1], [1], [0], [0], [0, 0, 1, 0], [], []>} : vector<1x32xf32>, vector<5x32xf32>, vector<1x5xf32> -> vector<1x5xf32>
    %cst_43 = arith.constant dense<0xFF800000> : vector<1xf32>
    %139 = vector.multi_reduction <maximumf>, %138, %cst_43 [1] : vector<1x5xf32> to vector<1xf32>
    %140 = vector.shape_cast %139 : vector<1xf32> to vector<1x1xf32>
    %141 = vector.broadcast %140 : vector<1x1xf32> to vector<1x5xf32>
    %142 = arith.subf %138, %141 : vector<1x5xf32>
    %143 = math.exp %142 : vector<1x5xf32>
    %cst_44 = arith.constant dense<0.000000e+00> : vector<1xf32>
    %144 = vector.multi_reduction <add>, %143, %cst_44 [1] : vector<1x5xf32> to vector<1xf32>
    %145 = vector.shape_cast %144 : vector<1xf32> to vector<1x1xf32>
    %146 = tpu.reciprocal %145 {approx = true} : vector<1x1xf32> -> vector<1x1xf32>
    %147 = vector.broadcast %146 : vector<1x1xf32> to vector<1x5xf32>
    %148 = arith.mulf %143, %147 : vector<1x5xf32>
    %cst_45 = arith.constant dense<0.000000e+00> : vector<1x48xf32>
    %149 = tpu.matmul %148, %44, %cst_45 {dimension_numbers = #tpu.dot_dimension_numbers<[1], [0], [0], [1], [0, 0, 1, 1], [], []>} : vector<1x5xf32>, vector<5x48xf32>, vector<1x48xf32> -> vector<1x48xf32>
    %150 = vector.extract_strided_slice %29 {offsets = [0, 384], sizes = [48, 8], strides = [1, 1]} : vector<48x768xf32> to vector<48x8xf32>
    %cst_46 = arith.constant dense<0.000000e+00> : vector<1x8xf32>
    %151 = tpu.matmul %149, %150, %cst_46 {dimension_numbers = #tpu.dot_dimension_numbers<[1], [0], [0], [1], [0, 0, 1, 1], [], []>} : vector<1x48xf32>, vector<48x8xf32>, vector<1x8xf32> -> vector<1x8xf32>
    %152 = vector.extract_strided_slice %32 {offsets = [12, 0], sizes = [1, 8], strides = [1, 1]} : vector<18x128xf32> to vector<1x8xf32>
    %153 = arith.addf %151, %152 : vector<1x8xf32>
    %cst_47 = arith.constant 0.000000e+00 : f32
    %154 = vector.broadcast %cst_47 : f32 to vector<1x8xf32>
    %155 = tpu.concatenate %153, %133, %154 in 1 : vector<1x8xf32>, vector<1x32xf32>, vector<1x8xf32> -> vector<1x48xf32>
    %156 = vector.extract_strided_slice %29 {offsets = [0, 640], sizes = [48, 16], strides = [1, 1]} : vector<48x768xf32> to vector<48x16xf32>
    %cst_48 = arith.constant dense<0.000000e+00> : vector<1x16xf32>
    %157 = tpu.matmul %155, %156, %cst_48 {dimension_numbers = #tpu.dot_dimension_numbers<[1], [0], [0], [1], [0, 0, 1, 1], [], []>} : vector<1x48xf32>, vector<48x16xf32>, vector<1x16xf32> -> vector<1x16xf32>
    %158 = vector.extract_strided_slice %32 {offsets = [13, 0], sizes = [1, 16], strides = [1, 1]} : vector<18x128xf32> to vector<1x16xf32>
    %159 = arith.addf %157, %158 : vector<1x16xf32>
    %cst_49 = arith.constant 0.000000e+00 : f32
    %160 = vector.broadcast %cst_49 : f32 to vector<1x16xf32>
    %161 = arith.maximumf %159, %160 : vector<1x16xf32>
    %162 = tpu.concatenate %133, %161 in 1 : vector<1x32xf32>, vector<1x16xf32> -> vector<1x48xf32>
    %163 = vector.extract_strided_slice %29 {offsets = [0, 256], sizes = [48, 32], strides = [1, 1]} : vector<48x768xf32> to vector<48x32xf32>
    %cst_50 = arith.constant dense<0.000000e+00> : vector<1x32xf32>
    %164 = tpu.matmul %162, %163, %cst_50 {dimension_numbers = #tpu.dot_dimension_numbers<[1], [0], [0], [1], [0, 0, 1, 1], [], []>} : vector<1x48xf32>, vector<48x32xf32>, vector<1x32xf32> -> vector<1x32xf32>
    %165 = vector.extract_strided_slice %32 {offsets = [10, 0], sizes = [1, 32], strides = [1, 1]} : vector<18x128xf32> to vector<1x32xf32>
    %166 = arith.addf %164, %165 : vector<1x32xf32>
    %cst_51 = arith.constant dense<0.000000e+00> : vector<1x5xf32>
    %167 = tpu.matmul %166, %45, %cst_51 {dimension_numbers = #tpu.dot_dimension_numbers<[1], [1], [0], [0], [0, 0, 1, 0], [], []>} : vector<1x32xf32>, vector<5x32xf32>, vector<1x5xf32> -> vector<1x5xf32>
    %cst_52 = arith.constant dense<0xFF800000> : vector<1xf32>
    %168 = vector.multi_reduction <maximumf>, %167, %cst_52 [1] : vector<1x5xf32> to vector<1xf32>
    %169 = vector.shape_cast %168 : vector<1xf32> to vector<1x1xf32>
    %170 = vector.broadcast %169 : vector<1x1xf32> to vector<1x5xf32>
    %171 = arith.subf %167, %170 : vector<1x5xf32>
    %172 = math.exp %171 : vector<1x5xf32>
    %cst_53 = arith.constant dense<0.000000e+00> : vector<1xf32>
    %173 = vector.multi_reduction <add>, %172, %cst_53 [1] : vector<1x5xf32> to vector<1xf32>
    %174 = vector.shape_cast %173 : vector<1xf32> to vector<1x1xf32>
    %175 = tpu.reciprocal %174 {approx = true} : vector<1x1xf32> -> vector<1x1xf32>
    %176 = vector.broadcast %175 : vector<1x1xf32> to vector<1x5xf32>
    %177 = arith.mulf %172, %176 : vector<1x5xf32>
    %cst_54 = arith.constant dense<0.000000e+00> : vector<1x48xf32>
    %178 = tpu.matmul %177, %46, %cst_54 {dimension_numbers = #tpu.dot_dimension_numbers<[1], [0], [0], [1], [0, 0, 1, 1], [], []>} : vector<1x5xf32>, vector<5x48xf32>, vector<1x48xf32> -> vector<1x48xf32>
    %179 = vector.extract_strided_slice %29 {offsets = [0, 512], sizes = [48, 20], strides = [1, 1]} : vector<48x768xf32> to vector<48x20xf32>
    %cst_55 = arith.constant dense<0.000000e+00> : vector<1x20xf32>
    %180 = tpu.matmul %178, %179, %cst_55 {dimension_numbers = #tpu.dot_dimension_numbers<[1], [0], [0], [1], [0, 0, 1, 1], [], []>} : vector<1x48xf32>, vector<48x20xf32>, vector<1x20xf32> -> vector<1x20xf32>
    %181 = vector.extract_strided_slice %180 {offsets = [0, 0], sizes = [1, 4], strides = [1, 1]} : vector<1x20xf32> to vector<1x4xf32>
    %182 = vector.extract_strided_slice %32 {offsets = [15, 0], sizes = [1, 4], strides = [1, 1]} : vector<18x128xf32> to vector<1x4xf32>
    %183 = arith.addf %181, %182 : vector<1x4xf32>
    %184 = vector.extract_strided_slice %180 {offsets = [0, 4], sizes = [1, 16], strides = [1, 1]} : vector<1x20xf32> to vector<1x16xf32>
    %185 = vector.extract_strided_slice %32 {offsets = [16, 0], sizes = [1, 16], strides = [1, 1]} : vector<18x128xf32> to vector<1x16xf32>
    %186 = arith.addf %184, %185 : vector<1x16xf32>
    %cst_56 = arith.constant 0.000000e+00 : f32
    %187 = vector.broadcast %cst_56 : f32 to vector<1x16xf32>
    %188 = arith.maximumf %186, %187 : vector<1x16xf32>
    %189 = tpu.concatenate %161, %188 in 0 : vector<1x16xf32>, vector<1x16xf32> -> vector<2x16xf32>
    %cst_57 = arith.constant dense<0.000000e+00> : vector<2x12xf32>
    %190 = tpu.matmul %189, %31, %cst_57 {dimension_numbers = #tpu.dot_dimension_numbers<[1], [0], [0], [1], [0, 0, 1, 1], [], []>} : vector<2x16xf32>, vector<16x12xf32>, vector<2x12xf32> -> vector<2x12xf32>
    %191 = vector.extract_strided_slice %190 {offsets = [0, 0], sizes = [1, 6], strides = [1, 1]} : vector<2x12xf32> to vector<1x6xf32>
    %192 = vector.extract_strided_slice %32 {offsets = [14, 0], sizes = [1, 6], strides = [1, 1]} : vector<18x128xf32> to vector<1x6xf32>
    %193 = arith.addf %191, %192 : vector<1x6xf32>
    %194 = vector.extract_strided_slice %190 {offsets = [1, 6], sizes = [1, 6], strides = [1, 1]} : vector<2x12xf32> to vector<1x6xf32>
    %195 = vector.extract_strided_slice %32 {offsets = [17, 0], sizes = [1, 6], strides = [1, 1]} : vector<18x128xf32> to vector<1x6xf32>
    %196 = arith.addf %194, %195 : vector<1x6xf32>
    %cst_58 = arith.constant 0.000000e+00 : f32
    %197 = vector.broadcast %cst_58 : f32 to vector<1x122xf32>
    %198 = tpu.concatenate %193, %197 in 1 : vector<1x6xf32>, vector<1x122xf32> -> vector<1x128xf32>
    %cst_59 = arith.constant 0.000000e+00 : f32
    %199 = vector.broadcast %cst_59 : f32 to vector<1x112xf32>
    %200 = tpu.concatenate %161, %199 in 1 : vector<1x16xf32>, vector<1x112xf32> -> vector<1x128xf32>
    %cst_60 = arith.constant 0.000000e+00 : f32
    %201 = vector.broadcast %cst_60 : f32 to vector<1x122xf32>
    %202 = tpu.concatenate %196, %201 in 1 : vector<1x6xf32>, vector<1x122xf32> -> vector<1x128xf32>
    %cst_61 = arith.constant 0.000000e+00 : f32
    %203 = vector.broadcast %cst_61 : f32 to vector<1x112xf32>
    %204 = tpu.concatenate %188, %203 in 1 : vector<1x16xf32>, vector<1x112xf32> -> vector<1x128xf32>
    %cst_62 = arith.constant 0.000000e+00 : f32
    %205 = vector.broadcast %cst_62 : f32 to vector<1x124xf32>
    %206 = tpu.concatenate %183, %205 in 1 : vector<1x4xf32>, vector<1x124xf32> -> vector<1x128xf32>
    %cst_63 = arith.constant 0.000000e+00 : f32
    %207 = vector.broadcast %cst_63 : f32 to vector<1x96xf32>
    %208 = tpu.concatenate %133, %207 in 1 : vector<1x32xf32>, vector<1x96xf32> -> vector<1x128xf32>
    %cst_64 = arith.constant 0.000000e+00 : f32
    %209 = vector.broadcast %cst_64 : f32 to vector<2x128xf32>
    %210 = tpu.concatenate %198, %200, %202, %204, %206, %208, %209 in 0 : vector<1x128xf32>, vector<1x128xf32>, vector<1x128xf32>, vector<1x128xf32>, vector<1x128xf32>, vector<1x128xf32>, vector<2x128xf32> -> vector<8x128xf32>
    %c0_65 = arith.constant 0 : index
    %c0_66 = arith.constant 0 : index
    %211 = vector.load %arg10[%c0_65, %c0_66] : memref<8x128xf32, #tpu.memory_space<vmem>>, vector<8x128xf32>
    tpu.vector_store %arg10[%c0_65, %c0_66], %210 {strides = array<i32>} : memref<8x128xf32, #tpu.memory_space<vmem>>, vector<8x128xf32>,
    return
  }
  func.func @transform_0(%arg0: i32, %arg1: memref<8xi32, #tpu.memory_space<smem>>) -> (i32, i32) {
    %c0_i32 = arith.constant 0 : i32
    %c0_i32_0 = arith.constant 0 : i32
    %c0_i32_1 = arith.constant 0 : i32
    return %c0_i32, %c0_i32_0 : i32, i32
  }
  func.func @transform_1(%arg0: i32, %arg1: memref<8xi32, #tpu.memory_space<smem>>) -> (i32, i32) {
    %c0_i32 = arith.constant 0 : i32
    %c0_i32_0 = arith.constant 0 : i32
    %c0_i32_1 = arith.constant 0 : i32
    return %c0_i32, %c0_i32_0 : i32, i32
  }
  func.func @transform_2(%arg0: i32, %arg1: memref<8xi32, #tpu.memory_space<smem>>) -> (i32, i32) {
    %c0_i32 = arith.constant 0 : i32
    %c0_i32_0 = arith.constant 0 : i32
    %c0_i32_1 = arith.constant 0 : i32
    return %c0_i32, %c0_i32_0 : i32, i32
  }
  func.func @transform_3(%arg0: i32, %arg1: memref<8xi32, #tpu.memory_space<smem>>) -> (i32, i32) {
    %c0_i32 = arith.constant 0 : i32
    %c0_i32_0 = arith.constant 0 : i32
    %c0_i32_1 = arith.constant 0 : i32
    return %c0_i32, %c0_i32_0 : i32, i32
  }
  func.func @transform_4(%arg0: i32, %arg1: memref<8xi32, #tpu.memory_space<smem>>) -> (i32, i32) {
    %c0_i32 = arith.constant 0 : i32
    %c0_i32_0 = arith.constant 0 : i32
    %c0_i32_1 = arith.constant 0 : i32
    return %c0_i32, %c0_i32_0 : i32, i32
  }
  func.func @transform_5(%arg0: i32, %arg1: memref<8xi32, #tpu.memory_space<smem>>) -> (i32, i32) {
    %c0_i32 = arith.constant 0 : i32
    %c0_i32_0 = arith.constant 0 : i32
    %c0_i32_1 = arith.constant 0 : i32
    return %c0_i32, %c0_i32_0 : i32, i32
  }
  func.func @transform_6(%arg0: i32, %arg1: memref<8xi32, #tpu.memory_space<smem>>) -> (i32, i32) {
    %c0_i32 = arith.constant 0 : i32
    %c0_i32_0 = arith.constant 0 : i32
    %c0_i32_1 = arith.constant 0 : i32
    return %c0_i32, %c0_i32_0 : i32, i32
  }
  func.func @transform_7(%arg0: i32, %arg1: memref<8xi32, #tpu.memory_space<smem>>) -> (i32, i32) {
    %c0_i32 = arith.constant 0 : i32
    %c0_i32_0 = arith.constant 0 : i32
    %c0_i32_1 = arith.constant 0 : i32
    return %c0_i32, %c0_i32_0 : i32, i32
  }
  func.func @transform_8(%arg0: i32, %arg1: memref<8xi32, #tpu.memory_space<smem>>) -> (i32, i32) {
    %c0_i32 = arith.constant 0 : i32
    %c0_i32_0 = arith.constant 0 : i32
    %c0_i32_1 = arith.constant 0 : i32
    return %c0_i32, %c0_i32_0 : i32, i32
  }
}

</mosaic_0001>

<llo_original>
// kernel: control_module_forward.1
$region0: #{control_module_forward.1}
  #allocation0 [shape = 'u32[]', space=smem, size = 0x4, offset = 0x4, fixed_abs, tag = 'smem constant byte address 0x4 - core index']
  #allocation1 [shape = 'u32[144,128]{1,0:T(1,128)}', space=vmem, size = 0x12000, scoped, tag = 'internal scratch']
  #allocation2 [shape = 's32[1]{0}', space=sflag, size = 0x4, scoped, tag = 'scoped memory for control_module_forward.1']
  #allocation3 [shape = 'u8[512]{0}', space=smem, size = 0x200, scoped, tag = 'prefetched SMEM operand 0']
  %s0 = inlined_call_operand.vmem [shape: s32[8], index: 0, kind: input, shape index: {}]
  %s1 = inlined_call_operand.vmem [shape: f32[5,48], index: 1, kind: input, shape index: {}]
  %s2 = inlined_call_operand.vmem [shape: f32[100,32], index: 2, kind: input, shape index: {}]
  %s3 = inlined_call_operand.vmem [shape: f32[8,32], index: 3, kind: input, shape index: {}]
  %s4 = inlined_call_operand.vmem [shape: f32[32,512], index: 4, kind: input, shape index: {}]
  %s5 = inlined_call_operand.hbm [shape: f32[48,768], index: 5, kind: input, shape index: {}]
  %s6 = inlined_call_operand.vmem [shape: f32[64,32], index: 6, kind: input, shape index: {}]
  %s7 = inlined_call_operand.vmem [shape: f32[16,12], index: 7, kind: input, shape index: {}]
  %s8 = inlined_call_operand.vmem [shape: f32[18,128], index: 8, kind: input, shape index: {}]
  %s9 = inlined_call_operand.vmem [shape: f32[8,128], index: 9, kind: output, shape index: {}]
  %s10 = sld [smem:[#allocation0]]
  $region46: #{control_module_forward.1} parent=0
    _
  %s12 = ssub.s32 1, %s10
  %s13 = scalar_select 0, %s12, %s10
  %s14 = sshll.u32 %s0, 4
  %s15 = int_to_ptr.vmem [resolvable:$true] %s14
  %17 = dma.vmem_to_smem %s15, 16, [#allocation3], [#allocation2]
  %18 = dma.done [#allocation2], 16
  %19 = sfence
  $region1: #{control_module_forward.1} parent=0
    #allocation4 [shape = 'u8[147456]{0}', space=vmem, size = 0x24000, scoped, tag = 'input window, operand 5, single buffered']
    #allocation5 [shape = 's32[1]{0}', space=sflag, size = 0x4, scoped, tag = 'scoped memory for control_module_forward.1']
    %20 = vsyncpa [#allocation5], 0
    // Predicated region
    $region2: #{control_module_forward.1} parent=1 // pred_check
      _
    $region3: #{control_module_forward.1} parent=1 // pred_check_branch
      %22 = sbr.rel (0) target = $region5
    $region4: #{control_module_forward.1} parent=1 // pred_region
      _
    $region5: #{control_module_forward.1} parent=1 // pred_fallthru
      _
    // Predicated region
    $region6: #{control_module_forward.1} parent=1 // pred_check
      _
    $region7: #{control_module_forward.1} parent=1 // pred_check_branch
      %24 = sbr.rel (0) target = $region9
    $region8: #{control_module_forward.1} parent=1 // pred_region
      _
    $region9: #{control_module_forward.1} parent=1 // pred_fallthru
      _
    // Predicated region
    $region10: #{control_module_forward.1} parent=1 // pred_check
      _
    $region11: #{control_module_forward.1} parent=1 // pred_check_branch
      %26 = sbr.rel (0) target = $region13
    $region12: #{control_module_forward.1} parent=1 // pred_region
      _
    $region13: #{control_module_forward.1} parent=1 // pred_fallthru
      _
    // Predicated region
    $region14: #{control_module_forward.1} parent=1 // pred_check
      _
    $region15: #{control_module_forward.1} parent=1 // pred_check_branch
      %28 = sbr.rel (0) target = $region17
    $region16: #{control_module_forward.1} parent=1 // pred_region
      _
    $region17: #{control_module_forward.1} parent=1 // pred_fallthru
      _
    // Predicated region
    $region18: #{control_module_forward.1} parent=1 // pred_check
      _
    $region19: #{control_module_forward.1} parent=1 // pred_check_branch
      %30 = sbr.rel (0) target = $region21
    $region20: #{control_module_forward.1} parent=1 // pred_region
      %s32 = ssub.s32 4608, 4608
      %33 = vsyncadd [#allocation5], %s32
      %s34 = sshll.u32 [#allocation4], 4
      %s35 = int_to_ptr.vmem [resolvable:$true] %s34
      %40 = dma.hbm_to_vmem [thread:$0]  %s5, 4608, %s35, [#allocation5], 768, 768, 48
    $region21: #{control_module_forward.1} parent=1 // pred_fallthru
      _
    // Predicated region
    $region22: #{control_module_forward.1} parent=1 // pred_check
      _
    $region23: #{control_module_forward.1} parent=1 // pred_check_branch
      %42 = sbr.rel (0) target = $region25
    $region24: #{control_module_forward.1} parent=1 // pred_region
      _
    $region25: #{control_module_forward.1} parent=1 // pred_fallthru
      _
    // Predicated region
    $region26: #{control_module_forward.1} parent=1 // pred_check
      _
    $region27: #{control_module_forward.1} parent=1 // pred_check_branch
      %44 = sbr.rel (0) target = $region29
    $region28: #{control_module_forward.1} parent=1 // pred_region
      _
    $region29: #{control_module_forward.1} parent=1 // pred_fallthru
      _
    // Predicated region
    $region30: #{control_module_forward.1} parent=1 // pred_check
      _
    $region31: #{control_module_forward.1} parent=1 // pred_check_branch
      %46 = sbr.rel (0) target = $region33
    $region32: #{control_module_forward.1} parent=1 // pred_region
      _
    $region33: #{control_module_forward.1} parent=1 // pred_fallthru
      _
    // Predicated region
    $region34: #{control_module_forward.1} parent=1 // pred_check
      _
    $region35: #{control_module_forward.1} parent=1 // pred_check_branch
      %48 = sbr.rel (0) target = $region37
    $region36: #{control_module_forward.1} parent=1 // pred_region
      %49 = dma.done [#allocation5], 4608
    $region37: #{control_module_forward.1} parent=1 // pred_fallthru
      _
    %s50 = sld [smem:[#allocation3]]
    %s51 = scalar_lea.vmem %s2, %s50
    %v52 = vld [vmem:[%s51] sm:$0x1]
    %s53 = sld [smem:[#allocation3 + $0x1]]
    %s54 = scalar_lea.vmem %s2, %s53
    %v55 = vld [vmem:[%s54] sm:$0x1]
    %s56 = sld [smem:[#allocation3 + $0x2]]
    %s57 = scalar_lea.vmem %s2, %s56
    %v58 = vld [vmem:[%s57] sm:$0x1]
    %s59 = sld [smem:[#allocation3 + $0x3]]
    %s60 = scalar_lea.vmem %s2, %s59
    %v61 = vld [vmem:[%s60] sm:$0x1]
    %s62 = sld [smem:[#allocation3 + $0x4]]
    %s63 = scalar_lea.vmem %s2, %s62
    %v64 = vld [vmem:[%s63] sm:$0x1]
    %s65 = sld [smem:[#allocation3 + $0x5]]
    %s66 = scalar_lea.vmem %s2, %s65
    %v67 = vld [vmem:[%s66] sm:$0x1]
    %s68 = sld [smem:[#allocation3 + $0x6]]
    %s69 = scalar_lea.vmem %s2, %s68
    %v70 = vld [vmem:[%s69] sm:$0x1]
    %s71 = sld [smem:[#allocation3 + $0x7]]
    %s72 = scalar_lea.vmem %s2, %s71
    %v73 = vld [vmem:[%s72] sm:$0x1]
    %v75 = vrot.slane %v55, 7
    %v78 = vrot.slane %v58, 6
    %v81 = vrot.slane %v61, 5
    %v84 = vrot.slane %v64, 4
    %v87 = vrot.slane %v67, 3
    %v90 = vrot.slane %v70, 2
    %v93 = vrot.slane %v73, 1
    %vm95 = vcmask 1040384
    %v96 = vsel %vm95, %v52, %v75
    %vm97 = vcmask 1041408
    %v98 = vsel %vm97, %v96, %v78
    %vm99 = vcmask 1042432
    %v100 = vsel %vm99, %v98, %v81
    %vm101 = vcmask 1043456
    %v102 = vsel %vm101, %v100, %v84
    %vm103 = vcmask 1044480
    %v104 = vsel %vm103, %v102, %v87
    %vm105 = vcmask 1045504
    %v106 = vsel %vm105, %v104, %v90
    %vm107 = vcmask 1046528
    %v108 = vsel %vm107, %v106, %v93
    %v109 = vld [vmem:[%s3] sm:$0xff]
    %v110 = vadd.f32 %v108, %v109
    %v111 = vld [vmem:[%s1] sm:$0x1f]
    %v112 = vld [vmem:[%s4] sm:$0xff]
    %v113 = vld [vmem:[%s4 + $0x8] sm:$0xff]
    %v114 = vld [vmem:[%s4 + $0x10] sm:$0xff]
    %v115 = vld [vmem:[%s4 + $0x18] sm:$0xff]
    %v116 = vld [vmem:[%s4 + $0x20] sm:$0xff]
    %v117 = vld [vmem:[%s4 + $0x28] sm:$0xff]
    %v118 = vld [vmem:[%s4 + $0x30] sm:$0xff]
    %v119 = vld [vmem:[%s4 + $0x38] sm:$0xff]
    %v120 = vld [vmem:[%s4 + $0x40] sm:$0xff]
    %v121 = vld [vmem:[%s4 + $0x48] sm:$0xff]
    %v122 = vld [vmem:[%s4 + $0x50] sm:$0xff]
    %v123 = vld [vmem:[%s4 + $0x58] sm:$0xff]
    %v124 = vld [vmem:[%s4 + $0x60] sm:$0xff]
    %v125 = vld [vmem:[%s4 + $0x68] sm:$0xff]
    %v126 = vld [vmem:[%s4 + $0x70] sm:$0xff]
    %v127 = vld [vmem:[%s4 + $0x78] sm:$0xff]
    %v128 = vld [vmem:[#allocation4] sm:$0xff]
    %v129 = vld [vmem:[#allocation4 + $0x8] sm:$0xff]
    %v130 = vld [vmem:[#allocation4 + $0x10] sm:$0xff]
    %v131 = vld [vmem:[#allocation4 + $0x18] sm:$0xff]
    %v132 = vld [vmem:[#allocation4 + $0x20] sm:$0xff]
    %v133 = vld [vmem:[#allocation4 + $0x28] sm:$0xff]
    %v134 = vld [vmem:[#allocation4 + $0x30] sm:$0xff]
    %v135 = vld [vmem:[#allocation4 + $0x38] sm:$0xff]
    %v136 = vld [vmem:[#allocation4 + $0x40] sm:$0xff]
    %v137 = vld [vmem:[#allocation4 + $0x48] sm:$0xff]
    %v138 = vld [vmem:[#allocation4 + $0x50] sm:$0xff]
    %v139 = vld [vmem:[#allocation4 + $0x58] sm:$0xff]
    %v140 = vld [vmem:[#allocation4 + $0x60] sm:$0xff]
    %v141 = vld [vmem:[#allocation4 + $0x68] sm:$0xff]
    %v142 = vld [vmem:[#allocation4 + $0x70] sm:$0xff]
    %v143 = vld [vmem:[#allocation4 + $0x78] sm:$0xff]
    %v144 = vld [vmem:[#allocation4 + $0x80] sm:$0xff]
    %v145 = vld [vmem:[#allocation4 + $0x88] sm:$0xff]
    %v146 = vld [vmem:[#allocation4 + $0x90] sm:$0xff]
    %v147 = vld [vmem:[#allocation4 + $0x98] sm:$0xff]
    %v148 = vld [vmem:[#allocation4 + $0xa0] sm:$0xff]
    %v149 = vld [vmem:[#allocation4 + $0xa8] sm:$0xff]
    %v150 = vld [vmem:[#allocation4 + $0xb0] sm:$0xff]
    %v151 = vld [vmem:[#allocation4 + $0xb8] sm:$0xff]
    %v152 = vld [vmem:[#allocation4 + $0xc0] sm:$0xff]
    %v153 = vld [vmem:[#allocation4 + $0xc8] sm:$0xff]
    %v154 = vld [vmem:[#allocation4 + $0xd0] sm:$0xff]
    %v155 = vld [vmem:[#allocation4 + $0xd8] sm:$0xff]
    %v156 = vld [vmem:[#allocation4 + $0xe0] sm:$0xff]
    %v157 = vld [vmem:[#allocation4 + $0xe8] sm:$0xff]
    %v158 = vld [vmem:[#allocation4 + $0xf0] sm:$0xff]
    %v159 = vld [vmem:[#allocation4 + $0xf8] sm:$0xff]
    %v160 = vld [vmem:[#allocation4 + $0x100] sm:$0xff]
    %v161 = vld [vmem:[#allocation4 + $0x108] sm:$0xff]
    %v162 = vld [vmem:[#allocation4 + $0x110] sm:$0xff]
    %v163 = vld [vmem:[#allocation4 + $0x118] sm:$0xff]
    %v164 = vld [vmem:[%s6] sm:$0xff]
    %v165 = vld [vmem:[%s6 + $0x8] sm:$0xff]
    %v166 = vld [vmem:[%s6 + $0x10] sm:$0xff]
    %v167 = vld [vmem:[%s6 + $0x18] sm:$0xff]
    %v168 = vld [vmem:[%s6 + $0x20] sm:$0xff]
    %v169 = vld [vmem:[%s6 + $0x28] sm:$0xff]
    %v170 = vld [vmem:[%s6 + $0x30] sm:$0xff]
    %v171 = vld [vmem:[%s6 + $0x38] sm:$0xff]
    %v172 = vld [vmem:[%s7] sm:$0xff]
    %v173 = vld [vmem:[%s7 + $0x8] sm:$0xff]
    %v174 = vld [vmem:[%s8] sm:$0xff]
    %v175 = vld [vmem:[%s8 + $0x8] sm:$0xff]
    %v176 = vld [vmem:[%s8 + $0x10] sm:$0x3]
    %vm177 = vcmask 392192
    %v179 = vsel %vm177, %v111, 0
    %181 = vmatprep.subr.mxu0 %v129
    %182 = vmatpush1.msra.mxu0 %v128
    %183 = vmatprep.subr.mxu0 %v135
    %184 = vmatpush1.msra.mxu0 %v134
    %185 = vmatprep.subr.mxu0 %v141
    %186 = vmatpush1.msra.mxu0 %v140
    %187 = vmatprep.subr.mxu0 %v147
    %188 = vmatpush1.msra.mxu0 %v146
    %189 = vmatprep.subr.mxu0 %v153
    %190 = vmatpush1.msra.mxu0 %v152
    %191 = vmatprep.subr.mxu0 %v159
    %192 = vmatpush1.msra.mxu0 %v158
    %193 = vmatprep.subr.mxu0 0.0
    %194 = vmatpush1.msra.mxu0 0.0
    %195 = vmatprep.subr.mxu0 0.0
    %196 = vmatpush1.msra.mxu0 0.0
    %197 = vmatprep.subr.mxu0 0.0
    %198 = vmatpush1.msra.mxu0 0.0
    %199 = vmatprep.subr.mxu0 0.0
    %200 = vmatpush1.msra.mxu0 0.0
    %201 = vmatprep.subr.mxu0 0.0
    %202 = vmatpush1.msra.mxu0 0.0
    %203 = vmatprep.subr.mxu0 0.0
    %204 = vmatpush1.msra.mxu0 0.0
    %205 = vmatprep.subr.mxu0 0.0
    %206 = vmatpush1.msra.mxu0 0.0
    %207 = vmatprep.subr.mxu0 0.0
    %208 = vmatpush1.msra.mxu0 0.0
    %209 = vmatprep.subr.mxu0 0.0
    %210 = vmatpush1.msra.mxu0 0.0
    %211 = vmatprep.subr.mxu0 0.0
    %212 = vmatpush1.msra.mxu0 0.0
    %213 = vmatprep.subr.mxu0 0.0
    %214 = vmatpush1.msra.mxu0 0.0
    %215 = vmatprep.subr.mxu0 0.0
    %216 = vmatpush1.msra.mxu0 0.0
    %217 = vmatprep.subr.mxu0 0.0
    %218 = vmatpush1.msra.mxu0 0.0
    %219 = vmatprep.subr.mxu0 0.0
    %220 = vmatpush1.msra.mxu0 0.0
    %221 = vmatprep.subr.mxu0 0.0
    %222 = vmatpush1.msra.mxu0 0.0
    %223 = vmatprep.subr.mxu0 0.0
    %224 = vmatpush1.msra.mxu0 0.0
    %225 = vmatprep.subr.mxu0 0.0
    %226 = vmatpush1.msra.mxu0 0.0
    %227 = vmatprep.subr.mxu0 0.0
    %228 = vmatpush1.msra.mxu0 0.0
    %229 = vmatprep.subr.mxu0 0.0
    %230 = vmatpush1.msra.mxu0 0.0
    %231 = vmatprep.subr.mxu0 0.0
    %232 = vmatpush1.msra.mxu0 0.0
    %233 = vmatprep.subr.mxu0 0.0
    %234 = vmatpush1.msra.mxu0 0.0
    %235 = vmatprep.subr.mxu0 0.0
    %236 = vmatpush1.msra.mxu0 0.0
    %237 = vmatprep.subr.mxu0 0.0
    %238 = vmatpush1.msra.mxu0 0.0
    %239 = vmatprep.subr.mxu0 0.0
    %240 = vmatpush1.msra.mxu0 0.0
    %241 = vmatprep.subr.mxu0 0.0
    %242 = vmatpush1.msra.mxu0 0.0
    %243 = vmatprep.subr.mxu0 0.0
    %244 = vmatpush1.msra.mxu0 0.0
    %245 = vmatprep.mubr.f32.mxu0 0.0
    %246 = vmatmul.mubr.f32.gmra.mrb[0].mxu0 %v179
    %v247 = vpop.f32.mrb[0].mxu0
    %v248 = vadd.f32 0.0, %v247
    %v249 = vpop.f32.mrb[0].mxu0
    %v250 = vadd.f32 0.0, %v249
    %251 = vdwg.mxu0
    %v252 = vlaneseq
    %v253 = vshrl.u32 %v252, 7
    %v254 = vsub.s32 1, %v253
    %v255 = vrot.slane %v175, %v254
    %v256 = vadd.f32 %v248, %v255
    %v257 = vlaneseq
    %v258 = vshrl.u32 %v257, 7
    %v259 = vsub.s32 3, %v258
    %v260 = vrot.slane %v175, %v259
    %v261 = vadd.f32 %v250, %v260
    %vm262 = vcmask 261120
    %v263 = vsel %vm262, %v110, 0.0
    %264 = vadd.xlane.f32.xlu0 %v263
    %v265 = vpop.xlane.xlu0 %264
    %v266 = vrcp.pop 32.0
    %v267 = vmul.f32 %v265, %v266
    %v268 = vsub.f32 %v110, %v267
    %v269 = vmul.f32 %v268, %v268
    %v270 = vsel %vm262, %v269, 0.0
    %271 = vadd.xlane.f32.xlu0 %v270
    %v272 = vpop.xlane.xlu0 %271
    %v273 = vmul.f32 %v272, %v266
    %v274 = vadd.f32 %v273, 1e-05
    %v275 = vrsqrt.pop %v274
    %v276 = vmul.f32 %v268, %v275
    %v277 = vlaneseq
    %v278 = vshrl.u32 %v277, 7
    %v279 = vsub.s32 2, %v278
    %v280 = vrot.slane %v174, %v279
    %v281 = vmul.f32 %v276, %v280
    %v282 = vlaneseq
    %v283 = vshrl.u32 %v282, 7
    %v284 = vsub.s32 3, %v283
    %v285 = vrot.slane %v174, %v284
    %v286 = vadd.f32 %v281, %v285
    %v287 = vlaneseq
    %v288 = vshrl.u32 %v287, 7
    %v289 = vsub.s32 0, %v288
    %v290 = vrot.slane %v174, %v289
    %v292 = vsel %vm262, %v286, 0
    %294 = vmatprep.subr.mxu0 0.0
    %295 = vmatpush1.msra.mxu0 %v112
    %296 = vmatprep.subr.mxu0 0.0
    %297 = vmatpush1.msra.mxu0 %v116
    %298 = vmatprep.subr.mxu0 0.0
    %299 = vmatpush1.msra.mxu0 %v120
    %300 = vmatprep.subr.mxu0 0.0
    %301 = vmatpush1.msra.mxu0 %v124
    %302 = vmatprep.subr.mxu0 0.0
    %303 = vmatpush1.msra.mxu0 0.0
    %304 = vmatprep.subr.mxu0 0.0
    %305 = vmatpush1.msra.mxu0 0.0
    %306 = vmatprep.subr.mxu0 0.0
    %307 = vmatpush1.msra.mxu0 0.0
    %308 = vmatprep.subr.mxu0 0.0
    %309 = vmatpush1.msra.mxu0 0.0
    %310 = vmatprep.subr.mxu0 0.0
    %311 = vmatpush1.msra.mxu0 0.0
    %312 = vmatprep.subr.mxu0 0.0
    %313 = vmatpush1.msra.mxu0 0.0
    %314 = vmatprep.subr.mxu0 0.0
    %315 = vmatpush1.msra.mxu0 0.0
    %316 = vmatprep.subr.mxu0 0.0
    %317 = vmatpush1.msra.mxu0 0.0
    %318 = vmatprep.subr.mxu0 0.0
    %319 = vmatpush1.msra.mxu0 0.0
    %320 = vmatprep.subr.mxu0 0.0
    %321 = vmatpush1.msra.mxu0 0.0
    %322 = vmatprep.subr.mxu0 0.0
    %323 = vmatpush1.msra.mxu0 0.0
    %324 = vmatprep.subr.mxu0 0.0
    %325 = vmatpush1.msra.mxu0 0.0
    %326 = vmatprep.subr.mxu0 0.0
    %327 = vmatpush1.msra.mxu0 0.0
    %328 = vmatprep.subr.mxu0 0.0
    %329 = vmatpush1.msra.mxu0 0.0
    %330 = vmatprep.subr.mxu0 0.0
    %331 = vmatpush1.msra.mxu0 0.0
    %332 = vmatprep.subr.mxu0 0.0
    %333 = vmatpush1.msra.mxu0 0.0
    %334 = vmatprep.subr.mxu0 0.0
    %335 = vmatpush1.msra.mxu0 0.0
    %336 = vmatprep.subr.mxu0 0.0
    %337 = vmatpush1.msra.mxu0 0.0
    %338 = vmatprep.subr.mxu0 0.0
    %339 = vmatpush1.msra.mxu0 0.0
    %340 = vmatprep.subr.mxu0 0.0
    %341 = vmatpush1.msra.mxu0 0.0
    %342 = vmatprep.subr.mxu0 0.0
    %343 = vmatpush1.msra.mxu0 0.0
    %344 = vmatprep.subr.mxu0 0.0
    %345 = vmatpush1.msra.mxu0 0.0
    %346 = vmatprep.subr.mxu0 0.0
    %347 = vmatpush1.msra.mxu0 0.0
    %348 = vmatprep.subr.mxu0 0.0
    %349 = vmatpush1.msra.mxu0 0.0
    %350 = vmatprep.subr.mxu0 0.0
    %351 = vmatpush1.msra.mxu0 0.0
    %352 = vmatprep.subr.mxu0 0.0
    %353 = vmatpush1.msra.mxu0 0.0
    %354 = vmatprep.subr.mxu0 0.0
    %355 = vmatpush1.msra.mxu0 0.0
    %356 = vmatprep.subr.mxu0 0.0
    %357 = vmatpush1.msra.mxu0 0.0
    %358 = vmatprep.mubr.f32.mxu0 0.0
    %359 = vmatmul.mubr.f32.gmra.mrb[0].mxu0 %v292
    %v360 = vpop.f32.mrb[0].mxu0
    %v361 = vadd.f32 %v290, %v360
    %v362 = vpop.f32.mrb[0].mxu0
    %363 = vdwg.mxu0
    %365 = vrot.lane.b32.xlu0 %v361, 96
    %v366 = vpop.permute.xlu0 %365
    %v367 = vsel %vm262, %v361, 0
    %v369 = vsel %vm262, %v366, 0
    %371 = vmatprep.subr.mxu0 0.0
    %372 = vmatpush1.xpose.msra.mxu0 %v369
    %373 = vmatprep.subr.mxu0 0.0
    %374 = vmatpush1.xpose.msra.mxu0 0.0
    %375 = vmatprep.subr.mxu0 0.0
    %376 = vmatpush1.xpose.msra.mxu0 0.0
    %377 = vmatprep.subr.mxu0 0.0
    %378 = vmatpush1.xpose.msra.mxu0 0.0
    %379 = vmatprep.subr.mxu0 0.0
    %380 = vmatpush1.xpose.msra.mxu0 0.0
    %381 = vmatprep.subr.mxu0 0.0
    %382 = vmatpush1.xpose.msra.mxu0 0.0
    %383 = vmatprep.subr.mxu0 0.0
    %384 = vmatpush1.xpose.msra.mxu0 0.0
    %385 = vmatprep.subr.mxu0 0.0
    %386 = vmatpush1.xpose.msra.mxu0 0.0
    %387 = vmatprep.subr.mxu0 0.0
    %388 = vmatpush1.xpose.msra.mxu0 0.0
    %389 = vmatprep.subr.mxu0 0.0
    %390 = vmatpush1.xpose.msra.mxu0 0.0
    %391 = vmatprep.subr.mxu0 0.0
    %392 = vmatpush1.xpose.msra.mxu0 0.0
    %393 = vmatprep.subr.mxu0 0.0
    %394 = vmatpush1.xpose.msra.mxu0 0.0
    %395 = vmatprep.subr.mxu0 0.0
    %396 = vmatpush1.xpose.msra.mxu0 0.0
    %397 = vmatprep.subr.mxu0 0.0
    %398 = vmatpush1.xpose.msra.mxu0 0.0
    %399 = vmatprep.subr.mxu0 0.0
    %400 = vmatpush1.xpose.msra.mxu0 0.0
    %401 = vmatprep.subr.mxu0 0.0
    %402 = vmatpush1.xpose.msra.mxu0 0.0
    %403 = vmatprep.subr.mxu0 0.0
    %404 = vmatpush1.xpose.msra.mxu0 0.0
    %405 = vmatprep.subr.mxu0 0.0
    %406 = vmatpush1.xpose.msra.mxu0 0.0
    %407 = vmatprep.subr.mxu0 0.0
    %408 = vmatpush1.xpose.msra.mxu0 0.0
    %409 = vmatprep.subr.mxu0 0.0
    %410 = vmatpush1.xpose.msra.mxu0 0.0
    %411 = vmatprep.subr.mxu0 0.0
    %412 = vmatpush1.xpose.msra.mxu0 0.0
    %413 = vmatprep.subr.mxu0 0.0
    %414 = vmatpush1.xpose.msra.mxu0 0.0
    %415 = vmatprep.subr.mxu0 0.0
    %416 = vmatpush1.xpose.msra.mxu0 0.0
    %417 = vmatprep.subr.mxu0 0.0
    %418 = vmatpush1.xpose.msra.mxu0 0.0
    %419 = vmatprep.subr.mxu0 0.0
    %420 = vmatpush1.xpose.msra.mxu0 0.0
    %421 = vmatprep.subr.mxu0 0.0
    %422 = vmatpush1.xpose.msra.mxu0 0.0
    %423 = vmatprep.subr.mxu0 0.0
    %424 = vmatpush1.xpose.msra.mxu0 0.0
    %425 = vmatprep.subr.mxu0 0.0
    %426 = vmatpush1.xpose.msra.mxu0 0.0
    %427 = vmatprep.subr.mxu0 0.0
    %428 = vmatpush1.xpose.msra.mxu0 0.0
    %429 = vmatprep.subr.mxu0 0.0
    %430 = vmatpush1.xpose.msra.mxu0 0.0
    %431 = vmatprep.subr.mxu0 0.0
    %432 = vmatpush1.xpose.msra.mxu0 0.0
    %433 = vmatprep.subr.mxu0 0.0
    %434 = vmatpush1.xpose.msra.mxu0 0.0
    %435 = vmatprep.mubr.f32.mxu0 0.0
    %436 = vmatmul.mubr.f32.gmra.mrb[0].mxu0 %v367
    %v437 = vpop.f32.mrb[0].mxu0
    %v438 = vadd.f32 0.0, %v437
    %v439 = vpop.f32.mrb[0].mxu0
    %440 = vdwg.mxu0
    %vm441 = vcmask 64512
    %v442 = vsel %vm441, %v438, -inf
    %443 = vmax.xlane.f32.xlu0 %v442
    %v444 = vpop.xlane.xlu0 %443
    %v445 = vsub.f32 %v438, %v444
    %v446 = vmul.f32 %v445, 1.442695
    %v447 = vpow.pop %v446
    %v448 = vsel %vm441, %v447, 0.0
    %449 = vadd.xlane.f32.xlu0 %v448
    %v450 = vpop.xlane.xlu0 %449
    %v451 = vrcp.pop %v450
    %v452 = vmul.f32 %v447, %v451
    %453 = vrot.lane.b32.xlu0 %v361, 64
    %v454 = vpop.permute.xlu0 %453
    %v457 = vsel %vm441, %v452, 0
    %459 = vmatprep.subr.mxu0 0.0
    %460 = vmatpush1.msra.mxu0 %v454
    %461 = vmatprep.subr.mxu0 0.0
    %462 = vmatpush1.msra.mxu0 0.0
    %463 = vmatprep.subr.mxu0 0.0
    %464 = vmatpush1.msra.mxu0 0.0
    %465 = vmatprep.subr.mxu0 0.0
    %466 = vmatpush1.msra.mxu0 0.0
    %467 = vmatprep.subr.mxu0 0.0
    %468 = vmatpush1.msra.mxu0 0.0
    %469 = vmatprep.subr.mxu0 0.0
    %470 = vmatpush1.msra.mxu0 0.0
    %471 = vmatprep.subr.mxu0 0.0
    %472 = vmatpush1.msra.mxu0 0.0
    %473 = vmatprep.subr.mxu0 0.0
    %474 = vmatpush1.msra.mxu0 0.0
    %475 = vmatprep.subr.mxu0 0.0
    %476 = vmatpush1.msra.mxu0 0.0
    %477 = vmatprep.subr.mxu0 0.0
    %478 = vmatpush1.msra.mxu0 0.0
    %479 = vmatprep.subr.mxu0 0.0
    %480 = vmatpush1.msra.mxu0 0.0
    %481 = vmatprep.subr.mxu0 0.0
    %482 = vmatpush1.msra.mxu0 0.0
    %483 = vmatprep.subr.mxu0 0.0
    %484 = vmatpush1.msra.mxu0 0.0
    %485 = vmatprep.subr.mxu0 0.0
    %486 = vmatpush1.msra.mxu0 0.0
    %487 = vmatprep.subr.mxu0 0.0
    %488 = vmatpush1.msra.mxu0 0.0
    %489 = vmatprep.subr.mxu0 0.0
    %490 = vmatpush1.msra.mxu0 0.0
    %491 = vmatprep.subr.mxu0 0.0
    %492 = vmatpush1.msra.mxu0 0.0
    %493 = vmatprep.subr.mxu0 0.0
    %494 = vmatpush1.msra.mxu0 0.0
    %495 = vmatprep.subr.mxu0 0.0
    %496 = vmatpush1.msra.mxu0 0.0
    %497 = vmatprep.subr.mxu0 0.0
    %498 = vmatpush1.msra.mxu0 0.0
    %499 = vmatprep.subr.mxu0 0.0
    %500 = vmatpush1.msra.mxu0 0.0
    %501 = vmatprep.subr.mxu0 0.0
    %502 = vmatpush1.msra.mxu0 0.0
    %503 = vmatprep.subr.mxu0 0.0
    %504 = vmatpush1.msra.mxu0 0.0
    %505 = vmatprep.subr.mxu0 0.0
    %506 = vmatpush1.msra.mxu0 0.0
    %507 = vmatprep.subr.mxu0 0.0
    %508 = vmatpush1.msra.mxu0 0.0
    %509 = vmatprep.subr.mxu0 0.0
    %510 = vmatpush1.msra.mxu0 0.0
    %511 = vmatprep.subr.mxu0 0.0
    %512 = vmatpush1.msra.mxu0 0.0
    %513 = vmatprep.subr.mxu0 0.0
    %514 = vmatpush1.msra.mxu0 0.0
    %515 = vmatprep.subr.mxu0 0.0
    %516 = vmatpush1.msra.mxu0 0.0
    %517 = vmatprep.subr.mxu0 0.0
    %518 = vmatpush1.msra.mxu0 0.0
    %519 = vmatprep.subr.mxu0 0.0
    %520 = vmatpush1.msra.mxu0 0.0
    %521 = vmatprep.subr.mxu0 0.0
    %522 = vmatpush1.msra.mxu0 0.0
    %523 = vmatprep.mubr.f32.mxu0 0.0
    %524 = vmatmul.mubr.f32.gmra.mrb[0].mxu0 %v457
    %v525 = vpop.f32.mrb[0].mxu0
    %v526 = vadd.f32 0.0, %v525
    %v527 = vpop.f32.mrb[0].mxu0
    %528 = vdwg.mxu0
    %v529 = vlaneseq
    %v530 = vshrl.u32 %v529, 7
    %v531 = vsub.s32 1, %v530
    %v532 = vrot.slane %v174, %v531
    %v534 = vsel %vm262, %v526, 0
    %536 = vmatprep.subr.mxu0 0.0
    %537 = vmatpush1.msra.mxu0 %v113
    %538 = vmatprep.subr.mxu0 0.0
    %539 = vmatpush1.msra.mxu0 %v117
    %540 = vmatprep.subr.mxu0 0.0
    %541 = vmatpush1.msra.mxu0 %v121
    %542 = vmatprep.subr.mxu0 0.0
    %543 = vmatpush1.msra.mxu0 %v125
    %544 = vmatprep.subr.mxu0 0.0
    %545 = vmatpush1.msra.mxu0 0.0
    %546 = vmatprep.subr.mxu0 0.0
    %547 = vmatpush1.msra.mxu0 0.0
    %548 = vmatprep.subr.mxu0 0.0
    %549 = vmatpush1.msra.mxu0 0.0
    %550 = vmatprep.subr.mxu0 0.0
    %551 = vmatpush1.msra.mxu0 0.0
    %552 = vmatprep.subr.mxu0 0.0
    %553 = vmatpush1.msra.mxu0 0.0
    %554 = vmatprep.subr.mxu0 0.0
    %555 = vmatpush1.msra.mxu0 0.0
    %556 = vmatprep.subr.mxu0 0.0
    %557 = vmatpush1.msra.mxu0 0.0
    %558 = vmatprep.subr.mxu0 0.0
    %559 = vmatpush1.msra.mxu0 0.0
    %560 = vmatprep.subr.mxu0 0.0
    %561 = vmatpush1.msra.mxu0 0.0
    %562 = vmatprep.subr.mxu0 0.0
    %563 = vmatpush1.msra.mxu0 0.0
    %564 = vmatprep.subr.mxu0 0.0
    %565 = vmatpush1.msra.mxu0 0.0
    %566 = vmatprep.subr.mxu0 0.0
    %567 = vmatpush1.msra.mxu0 0.0
    %568 = vmatprep.subr.mxu0 0.0
    %569 = vmatpush1.msra.mxu0 0.0
    %570 = vmatprep.subr.mxu0 0.0
    %571 = vmatpush1.msra.mxu0 0.0
    %572 = vmatprep.subr.mxu0 0.0
    %573 = vmatpush1.msra.mxu0 0.0
    %574 = vmatprep.subr.mxu0 0.0
    %575 = vmatpush1.msra.mxu0 0.0
    %576 = vmatprep.subr.mxu0 0.0
    %577 = vmatpush1.msra.mxu0 0.0
    %578 = vmatprep.subr.mxu0 0.0
    %579 = vmatpush1.msra.mxu0 0.0
    %580 = vmatprep.subr.mxu0 0.0
    %581 = vmatpush1.msra.mxu0 0.0
    %582 = vmatprep.subr.mxu0 0.0
    %583 = vmatpush1.msra.mxu0 0.0
    %584 = vmatprep.subr.mxu0 0.0
    %585 = vmatpush1.msra.mxu0 0.0
    %586 = vmatprep.subr.mxu0 0.0
    %587 = vmatpush1.msra.mxu0 0.0
    %588 = vmatprep.subr.mxu0 0.0
    %589 = vmatpush1.msra.mxu0 0.0
    %590 = vmatprep.subr.mxu0 0.0
    %591 = vmatpush1.msra.mxu0 0.0
    %592 = vmatprep.subr.mxu0 0.0
    %593 = vmatpush1.msra.mxu0 0.0
    %594 = vmatprep.subr.mxu0 0.0
    %595 = vmatpush1.msra.mxu0 0.0
    %596 = vmatprep.subr.mxu0 0.0
    %597 = vmatpush1.msra.mxu0 0.0
    %598 = vmatprep.subr.mxu0 0.0
    %599 = vmatpush1.msra.mxu0 0.0
    %600 = vmatprep.mubr.f32.mxu0 0.0
    %601 = vmatmul.mubr.f32.gmra.mrb[0].mxu0 %v534
    %v602 = vpop.f32.mrb[0].mxu0
    %v603 = vadd.f32 %v532, %v602
    %v604 = vpop.f32.mrb[0].mxu0
    %605 = vdwg.mxu0
    %v606 = vadd.f32 %v110, %v603
    %v607 = vsel %vm262, %v606, 0.0
    %608 = vadd.xlane.f32.xlu0 %v607
    %v609 = vpop.xlane.xlu0 %608
    %v610 = vmul.f32 %v609, %v266
    %v611 = vsub.f32 %v606, %v610
    %v612 = vmul.f32 %v611, %v611
    %v613 = vsel %vm262, %v612, 0.0
    %614 = vadd.xlane.f32.xlu0 %v613
    %v615 = vpop.xlane.xlu0 %614
    %v616 = vmul.f32 %v615, %v266
    %v617 = vadd.f32 %v616, 1e-05
    %v618 = vrsqrt.pop %v617
    %v619 = vmul.f32 %v611, %v618
    %v620 = vlaneseq
    %v621 = vshrl.u32 %v620, 7
    %v622 = vsub.s32 4, %v621
    %v623 = vrot.slane %v174, %v622
    %v624 = vmul.f32 %v619, %v623
    %v625 = vlaneseq
    %v626 = vshrl.u32 %v625, 7
    %v627 = vsub.s32 5, %v626
    %v628 = vrot.slane %v174, %v627
    %v629 = vadd.f32 %v624, %v628
    %v630 = vlaneseq
    %v631 = vshrl.u32 %v630, 7
    %v632 = vsub.s32 6, %v631
    %v633 = vrot.slane %v174, %v632
    %v635 = vsel %vm262, %v629, 0
    %637 = vmatprep.subr.mxu0 0.0
    %638 = vmatpush1.msra.mxu0 %v114
    %639 = vmatprep.subr.mxu0 0.0
    %640 = vmatpush1.msra.mxu0 %v118
    %641 = vmatprep.subr.mxu0 0.0
    %642 = vmatpush1.msra.mxu0 %v122
    %643 = vmatprep.subr.mxu0 0.0
    %644 = vmatpush1.msra.mxu0 %v126
    %645 = vmatprep.subr.mxu0 0.0
    %646 = vmatpush1.msra.mxu0 0.0
    %647 = vmatprep.subr.mxu0 0.0
    %648 = vmatpush1.msra.mxu0 0.0
    %649 = vmatprep.subr.mxu0 0.0
    %650 = vmatpush1.msra.mxu0 0.0
    %651 = vmatprep.subr.mxu0 0.0
    %652 = vmatpush1.msra.mxu0 0.0
    %653 = vmatprep.subr.mxu0 0.0
    %654 = vmatpush1.msra.mxu0 0.0
    %655 = vmatprep.subr.mxu0 0.0
    %656 = vmatpush1.msra.mxu0 0.0
    %657 = vmatprep.subr.mxu0 0.0
    %658 = vmatpush1.msra.mxu0 0.0
    %659 = vmatprep.subr.mxu0 0.0
    %660 = vmatpush1.msra.mxu0 0.0
    %661 = vmatprep.subr.mxu0 0.0
    %662 = vmatpush1.msra.mxu0 0.0
    %663 = vmatprep.subr.mxu0 0.0
    %664 = vmatpush1.msra.mxu0 0.0
    %665 = vmatprep.subr.mxu0 0.0
    %666 = vmatpush1.msra.mxu0 0.0
    %667 = vmatprep.subr.mxu0 0.0
    %668 = vmatpush1.msra.mxu0 0.0
    %669 = vmatprep.subr.mxu0 0.0
    %670 = vmatpush1.msra.mxu0 0.0
    %671 = vmatprep.subr.mxu0 0.0
    %672 = vmatpush1.msra.mxu0 0.0
    %673 = vmatprep.subr.mxu0 0.0
    %674 = vmatpush1.msra.mxu0 0.0
    %675 = vmatprep.subr.mxu0 0.0
    %676 = vmatpush1.msra.mxu0 0.0
    %677 = vmatprep.subr.mxu0 0.0
    %678 = vmatpush1.msra.mxu0 0.0
    %679 = vmatprep.subr.mxu0 0.0
    %680 = vmatpush1.msra.mxu0 0.0
    %681 = vmatprep.subr.mxu0 0.0
    %682 = vmatpush1.msra.mxu0 0.0
    %683 = vmatprep.subr.mxu0 0.0
    %684 = vmatpush1.msra.mxu0 0.0
    %685 = vmatprep.subr.mxu0 0.0
    %686 = vmatpush1.msra.mxu0 0.0
    %687 = vmatprep.subr.mxu0 0.0
    %688 = vmatpush1.msra.mxu0 0.0
    %689 = vmatprep.subr.mxu0 0.0
    %690 = vmatpush1.msra.mxu0 0.0
    %691 = vmatprep.subr.mxu0 0.0
    %692 = vmatpush1.msra.mxu0 0.0
    %693 = vmatprep.subr.mxu0 0.0
    %694 = vmatpush1.msra.mxu0 0.0
    %695 = vmatprep.subr.mxu0 0.0
    %696 = vmatpush1.msra.mxu0 0.0
    %697 = vmatprep.subr.mxu0 0.0
    %698 = vmatpush1.msra.mxu0 0.0
    %699 = vmatprep.subr.mxu0 0.0
    %700 = vmatpush1.msra.mxu0 0.0
    %701 = vmatprep.mubr.f32.mxu0 0.0
    %702 = vmatmul.mubr.f32.gmra.mrb[0].mxu0 %v635
    %v703 = vpop.f32.mrb[0].mxu0
    %v704 = vadd.f32 %v633, %v703
    %v705 = vpop.f32.mrb[0].mxu0
    %706 = vdwg.mxu0
    %v707 = vmax.f32 %v704, 0.0
    %v708 = vlaneseq
    %v709 = vshrl.u32 %v708, 7
    %v710 = vsub.s32 7, %v709
    %v711 = vrot.slane %v174, %v710
    %vm712 = vcmask 523264
    %v714 = vsel %vm712, %v707, 0
    %716 = vmatprep.subr.mxu0 0.0
    %717 = vmatpush1.msra.mxu0 %v164
    %718 = vmatprep.subr.mxu0 0.0
    %719 = vmatpush1.msra.mxu0 %v165
    %720 = vmatprep.subr.mxu0 0.0
    %721 = vmatpush1.msra.mxu0 %v166
    %722 = vmatprep.subr.mxu0 0.0
    %723 = vmatpush1.msra.mxu0 %v167
    %724 = vmatprep.subr.mxu0 0.0
    %725 = vmatpush1.msra.mxu0 %v168
    %726 = vmatprep.subr.mxu0 0.0
    %727 = vmatpush1.msra.mxu0 %v169
    %728 = vmatprep.subr.mxu0 0.0
    %729 = vmatpush1.msra.mxu0 %v170
    %730 = vmatprep.subr.mxu0 0.0
    %731 = vmatpush1.msra.mxu0 %v171
    %732 = vmatprep.subr.mxu0 0.0
    %733 = vmatpush1.msra.mxu0 0.0
    %734 = vmatprep.subr.mxu0 0.0
    %735 = vmatpush1.msra.mxu0 0.0
    %736 = vmatprep.subr.mxu0 0.0
    %737 = vmatpush1.msra.mxu0 0.0
    %738 = vmatprep.subr.mxu0 0.0
    %739 = vmatpush1.msra.mxu0 0.0
    %740 = vmatprep.subr.mxu0 0.0
    %741 = vmatpush1.msra.mxu0 0.0
    %742 = vmatprep.subr.mxu0 0.0
    %743 = vmatpush1.msra.mxu0 0.0
    %744 = vmatprep.subr.mxu0 0.0
    %745 = vmatpush1.msra.mxu0 0.0
    %746 = vmatprep.subr.mxu0 0.0
    %747 = vmatpush1.msra.mxu0 0.0
    %748 = vmatprep.subr.mxu0 0.0
    %749 = vmatpush1.msra.mxu0 0.0
    %750 = vmatprep.subr.mxu0 0.0
    %751 = vmatpush1.msra.mxu0 0.0
    %752 = vmatprep.subr.mxu0 0.0
    %753 = vmatpush1.msra.mxu0 0.0
    %754 = vmatprep.subr.mxu0 0.0
    %755 = vmatpush1.msra.mxu0 0.0
    %756 = vmatprep.subr.mxu0 0.0
    %757 = vmatpush1.msra.mxu0 0.0
    %758 = vmatprep.subr.mxu0 0.0
    %759 = vmatpush1.msra.mxu0 0.0
    %760 = vmatprep.subr.mxu0 0.0
    %761 = vmatpush1.msra.mxu0 0.0
    %762 = vmatprep.subr.mxu0 0.0
    %763 = vmatpush1.msra.mxu0 0.0
    %764 = vmatprep.subr.mxu0 0.0
    %765 = vmatpush1.msra.mxu0 0.0
    %766 = vmatprep.subr.mxu0 0.0
    %767 = vmatpush1.msra.mxu0 0.0
    %768 = vmatprep.subr.mxu0 0.0
    %769 = vmatpush1.msra.mxu0 0.0
    %770 = vmatprep.subr.mxu0 0.0
    %771 = vmatpush1.msra.mxu0 0.0
    %772 = vmatprep.subr.mxu0 0.0
    %773 = vmatpush1.msra.mxu0 0.0
    %774 = vmatprep.subr.mxu0 0.0
    %775 = vmatpush1.msra.mxu0 0.0
    %776 = vmatprep.subr.mxu0 0.0
    %777 = vmatpush1.msra.mxu0 0.0
    %778 = vmatprep.subr.mxu0 0.0
    %779 = vmatpush1.msra.mxu0 0.0
    %780 = vmatprep.mubr.f32.mxu0 0.0
    %781 = vmatmul.mubr.f32.gmra.mrb[0].mxu0 %v714
    %v782 = vpop.f32.mrb[0].mxu0
    %v783 = vadd.f32 %v711, %v782
    %v784 = vpop.f32.mrb[0].mxu0
    %785 = vdwg.mxu0
    %v786 = vadd.f32 %v606, %v783
    %v788 = vsel %vm262, %v786, 0
    %790 = vmatprep.subr.mxu0 0.0
    %791 = vmatpush1.msra.mxu0 %v115
    %792 = vmatprep.subr.mxu0 0.0
    %793 = vmatpush1.msra.mxu0 %v119
    %794 = vmatprep.subr.mxu0 0.0
    %795 = vmatpush1.msra.mxu0 %v123
    %796 = vmatprep.subr.mxu0 0.0
    %797 = vmatpush1.msra.mxu0 %v127
    %798 = vmatprep.subr.mxu0 0.0
    %799 = vmatpush1.msra.mxu0 0.0
    %800 = vmatprep.subr.mxu0 0.0
    %801 = vmatpush1.msra.mxu0 0.0
    %802 = vmatprep.subr.mxu0 0.0
    %803 = vmatpush1.msra.mxu0 0.0
    %804 = vmatprep.subr.mxu0 0.0
    %805 = vmatpush1.msra.mxu0 0.0
    %806 = vmatprep.subr.mxu0 0.0
    %807 = vmatpush1.msra.mxu0 0.0
    %808 = vmatprep.subr.mxu0 0.0
    %809 = vmatpush1.msra.mxu0 0.0
    %810 = vmatprep.subr.mxu0 0.0
    %811 = vmatpush1.msra.mxu0 0.0
    %812 = vmatprep.subr.mxu0 0.0
    %813 = vmatpush1.msra.mxu0 0.0
    %814 = vmatprep.subr.mxu0 0.0
    %815 = vmatpush1.msra.mxu0 0.0
    %816 = vmatprep.subr.mxu0 0.0
    %817 = vmatpush1.msra.mxu0 0.0
    %818 = vmatprep.subr.mxu0 0.0
    %819 = vmatpush1.msra.mxu0 0.0
    %820 = vmatprep.subr.mxu0 0.0
    %821 = vmatpush1.msra.mxu0 0.0
    %822 = vmatprep.subr.mxu0 0.0
    %823 = vmatpush1.msra.mxu0 0.0
    %824 = vmatprep.subr.mxu0 0.0
    %825 = vmatpush1.msra.mxu0 0.0
    %826 = vmatprep.subr.mxu0 0.0
    %827 = vmatpush1.msra.mxu0 0.0
    %828 = vmatprep.subr.mxu0 0.0
    %829 = vmatpush1.msra.mxu0 0.0
    %830 = vmatprep.subr.mxu0 0.0
    %831 = vmatpush1.msra.mxu0 0.0
    %832 = vmatprep.subr.mxu0 0.0
    %833 = vmatpush1.msra.mxu0 0.0
    %834 = vmatprep.subr.mxu0 0.0
    %835 = vmatpush1.msra.mxu0 0.0
    %836 = vmatprep.subr.mxu0 0.0
    %837 = vmatpush1.msra.mxu0 0.0
    %838 = vmatprep.subr.mxu0 0.0
    %839 = vmatpush1.msra.mxu0 0.0
    %840 = vmatprep.subr.mxu0 0.0
    %841 = vmatpush1.msra.mxu0 0.0
    %842 = vmatprep.subr.mxu0 0.0
    %843 = vmatpush1.msra.mxu0 0.0
    %844 = vmatprep.subr.mxu0 0.0
    %845 = vmatpush1.msra.mxu0 0.0
    %846 = vmatprep.subr.mxu0 0.0
    %847 = vmatpush1.msra.mxu0 0.0
    %848 = vmatprep.subr.mxu0 0.0
    %849 = vmatpush1.msra.mxu0 0.0
    %850 = vmatprep.subr.mxu0 0.0
    %851 = vmatpush1.msra.mxu0 0.0
    %852 = vmatprep.subr.mxu0 0.0
    %853 = vmatpush1.msra.mxu0 0.0
    %854 = vmatprep.mubr.f32.mxu0 0.0
    %855 = vmatmul.mubr.f32.gmra.mrb[0].mxu0 %v788
    %v856 = vpop.f32.mrb[0].mxu0
    %v857 = vadd.f32 %v175, %v856
    %v858 = vpop.f32.mrb[0].mxu0
    %859 = vdwg.mxu0
    %v861 = vsel %vm262, %v857, 0
    %v864 = vsel %vm262, %v256, 0
    %866 = vmatprep.subr.mxu0 0.0
    %867 = vmatpush1.xpose.msra.mxu0 %v864
    %868 = vmatprep.subr.mxu0 0.0
    %869 = vmatpush1.xpose.msra.mxu0 0.0
    %870 = vmatprep.subr.mxu0 0.0
    %871 = vmatpush1.xpose.msra.mxu0 0.0
    %872 = vmatprep.subr.mxu0 0.0
    %873 = vmatpush1.xpose.msra.mxu0 0.0
    %874 = vmatprep.subr.mxu0 0.0
    %875 = vmatpush1.xpose.msra.mxu0 0.0
    %876 = vmatprep.subr.mxu0 0.0
    %877 = vmatpush1.xpose.msra.mxu0 0.0
    %878 = vmatprep.subr.mxu0 0.0
    %879 = vmatpush1.xpose.msra.mxu0 0.0
    %880 = vmatprep.subr.mxu0 0.0
    %881 = vmatpush1.xpose.msra.mxu0 0.0
    %882 = vmatprep.subr.mxu0 0.0
    %883 = vmatpush1.xpose.msra.mxu0 0.0
    %884 = vmatprep.subr.mxu0 0.0
    %885 = vmatpush1.xpose.msra.mxu0 0.0
    %886 = vmatprep.subr.mxu0 0.0
    %887 = vmatpush1.xpose.msra.mxu0 0.0
    %888 = vmatprep.subr.mxu0 0.0
    %889 = vmatpush1.xpose.msra.mxu0 0.0
    %890 = vmatprep.subr.mxu0 0.0
    %891 = vmatpush1.xpose.msra.mxu0 0.0
    %892 = vmatprep.subr.mxu0 0.0
    %893 = vmatpush1.xpose.msra.mxu0 0.0
    %894 = vmatprep.subr.mxu0 0.0
    %895 = vmatpush1.xpose.msra.mxu0 0.0
    %896 = vmatprep.subr.mxu0 0.0
    %897 = vmatpush1.xpose.msra.mxu0 0.0
    %898 = vmatprep.subr.mxu0 0.0
    %899 = vmatpush1.xpose.msra.mxu0 0.0
    %900 = vmatprep.subr.mxu0 0.0
    %901 = vmatpush1.xpose.msra.mxu0 0.0
    %902 = vmatprep.subr.mxu0 0.0
    %903 = vmatpush1.xpose.msra.mxu0 0.0
    %904 = vmatprep.subr.mxu0 0.0
    %905 = vmatpush1.xpose.msra.mxu0 0.0
    %906 = vmatprep.subr.mxu0 0.0
    %907 = vmatpush1.xpose.msra.mxu0 0.0
    %908 = vmatprep.subr.mxu0 0.0
    %909 = vmatpush1.xpose.msra.mxu0 0.0
    %910 = vmatprep.subr.mxu0 0.0
    %911 = vmatpush1.xpose.msra.mxu0 0.0
    %912 = vmatprep.subr.mxu0 0.0
    %913 = vmatpush1.xpose.msra.mxu0 0.0
    %914 = vmatprep.subr.mxu0 0.0
    %915 = vmatpush1.xpose.msra.mxu0 0.0
    %916 = vmatprep.subr.mxu0 0.0
    %917 = vmatpush1.xpose.msra.mxu0 0.0
    %918 = vmatprep.subr.mxu0 0.0
    %919 = vmatpush1.xpose.msra.mxu0 0.0
    %920 = vmatprep.subr.mxu0 0.0
    %921 = vmatpush1.xpose.msra.mxu0 0.0
    %922 = vmatprep.subr.mxu0 0.0
    %923 = vmatpush1.xpose.msra.mxu0 0.0
    %924 = vmatprep.subr.mxu0 0.0
    %925 = vmatpush1.xpose.msra.mxu0 0.0
    %926 = vmatprep.subr.mxu0 0.0
    %927 = vmatpush1.xpose.msra.mxu0 0.0
    %928 = vmatprep.subr.mxu0 0.0
    %929 = vmatpush1.xpose.msra.mxu0 0.0
    %930 = vmatprep.mubr.f32.mxu0 0.0
    %931 = vmatmul.mubr.f32.gmra.mrb[0].mxu0 %v861
    %v932 = vpop.f32.mrb[0].mxu0
    %v933 = vadd.f32 0.0, %v932
    %v934 = vpop.f32.mrb[0].mxu0
    %935 = vdwg.mxu0
    %vm936 = vcmask 32768
    %v937 = vsel %vm936, %v933, -inf
    %938 = vmax.xlane.f32.xlu0 %v937
    %v939 = vpop.xlane.xlu0 %938
    %v940 = vsub.f32 %v933, %v939
    %v941 = vmul.f32 %v940, 1.442695
    %v942 = vpow.pop %v941
    %v943 = vsel %vm936, %v942, 0.0
    %944 = vadd.xlane.f32.xlu0 %v943
    %v945 = vpop.xlane.xlu0 %944
    %v946 = vrcp.pop %v945
    %v947 = vmul.f32 %v942, %v946
    %948 = vrot.lane.b32.xlu0 %v256, 96
    %v949 = vpop.permute.xlu0 %948
    %vm950 = vcmask 39936
    %v952 = vsel %vm950, %v947, 0
    %v954 = vsel %vm103, %v949, 0
    %956 = vmatprep.subr.mxu0 0.0
    %957 = vmatpush1.msra.mxu0 %v954
    %958 = vmatprep.subr.mxu0 0.0
    %959 = vmatpush1.msra.mxu0 0.0
    %960 = vmatprep.subr.mxu0 0.0
    %961 = vmatpush1.msra.mxu0 0.0
    %962 = vmatprep.subr.mxu0 0.0
    %963 = vmatpush1.msra.mxu0 0.0
    %964 = vmatprep.subr.mxu0 0.0
    %965 = vmatpush1.msra.mxu0 0.0
    %966 = vmatprep.subr.mxu0 0.0
    %967 = vmatpush1.msra.mxu0 0.0
    %968 = vmatprep.subr.mxu0 0.0
    %969 = vmatpush1.msra.mxu0 0.0
    %970 = vmatprep.subr.mxu0 0.0
    %971 = vmatpush1.msra.mxu0 0.0
    %972 = vmatprep.subr.mxu0 0.0
    %973 = vmatpush1.msra.mxu0 0.0
    %974 = vmatprep.subr.mxu0 0.0
    %975 = vmatpush1.msra.mxu0 0.0
    %976 = vmatprep.subr.mxu0 0.0
    %977 = vmatpush1.msra.mxu0 0.0
    %978 = vmatprep.subr.mxu0 0.0
    %979 = vmatpush1.msra.mxu0 0.0
    %980 = vmatprep.subr.mxu0 0.0
    %981 = vmatpush1.msra.mxu0 0.0
    %982 = vmatprep.subr.mxu0 0.0
    %983 = vmatpush1.msra.mxu0 0.0
    %984 = vmatprep.subr.mxu0 0.0
    %985 = vmatpush1.msra.mxu0 0.0
    %986 = vmatprep.subr.mxu0 0.0
    %987 = vmatpush1.msra.mxu0 0.0
    %988 = vmatprep.subr.mxu0 0.0
    %989 = vmatpush1.msra.mxu0 0.0
    %990 = vmatprep.subr.mxu0 0.0
    %991 = vmatpush1.msra.mxu0 0.0
    %992 = vmatprep.subr.mxu0 0.0
    %993 = vmatpush1.msra.mxu0 0.0
    %994 = vmatprep.subr.mxu0 0.0
    %995 = vmatpush1.msra.mxu0 0.0
    %996 = vmatprep.subr.mxu0 0.0
    %997 = vmatpush1.msra.mxu0 0.0
    %998 = vmatprep.subr.mxu0 0.0
    %999 = vmatpush1.msra.mxu0 0.0
    %1000 = vmatprep.subr.mxu0 0.0
    %1001 = vmatpush1.msra.mxu0 0.0
    %1002 = vmatprep.subr.mxu0 0.0
    %1003 = vmatpush1.msra.mxu0 0.0
    %1004 = vmatprep.subr.mxu0 0.0
    %1005 = vmatpush1.msra.mxu0 0.0
    %1006 = vmatprep.subr.mxu0 0.0
    %1007 = vmatpush1.msra.mxu0 0.0
    %1008 = vmatprep.subr.mxu0 0.0
    %1009 = vmatpush1.msra.mxu0 0.0
    %1010 = vmatprep.subr.mxu0 0.0
    %1011 = vmatpush1.msra.mxu0 0.0
    %1012 = vmatprep.subr.mxu0 0.0
    %1013 = vmatpush1.msra.mxu0 0.0
    %1014 = vmatprep.subr.mxu0 0.0
    %1015 = vmatpush1.msra.mxu0 0.0
    %1016 = vmatprep.subr.mxu0 0.0
    %1017 = vmatpush1.msra.mxu0 0.0
    %1018 = vmatprep.subr.mxu0 0.0
    %1019 = vmatpush1.msra.mxu0 0.0
    %1020 = vmatprep.mubr.f32.mxu0 0.0
    %1021 = vmatmul.mubr.f32.gmra.mrb[0].mxu0 %v952
    %v1022 = vpop.f32.mrb[0].mxu0
    %v1023 = vadd.f32 0.0, %v1022
    %v1024 = vpop.f32.mrb[0].mxu0
    %1025 = vdwg.mxu0
    %v1027 = vrot.slane %v175, 4
    %v1030 = vsel %vm177, %v1023, 0
    %1032 = vmatprep.subr.mxu0 0.0
    %1033 = vmatpush1.msra.mxu0 %v131
    %1034 = vmatprep.subr.mxu0 0.0
    %1035 = vmatpush1.msra.mxu0 %v137
    %1036 = vmatprep.subr.mxu0 0.0
    %1037 = vmatpush1.msra.mxu0 %v143
    %1038 = vmatprep.subr.mxu0 0.0
    %1039 = vmatpush1.msra.mxu0 %v149
    %1040 = vmatprep.subr.mxu0 0.0
    %1041 = vmatpush1.msra.mxu0 %v155
    %1042 = vmatprep.subr.mxu0 0.0
    %1043 = vmatpush1.msra.mxu0 %v161
    %1044 = vmatprep.subr.mxu0 0.0
    %1045 = vmatpush1.msra.mxu0 0.0
    %1046 = vmatprep.subr.mxu0 0.0
    %1047 = vmatpush1.msra.mxu0 0.0
    %1048 = vmatprep.subr.mxu0 0.0
    %1049 = vmatpush1.msra.mxu0 0.0
    %1050 = vmatprep.subr.mxu0 0.0
    %1051 = vmatpush1.msra.mxu0 0.0
    %1052 = vmatprep.subr.mxu0 0.0
    %1053 = vmatpush1.msra.mxu0 0.0
    %1054 = vmatprep.subr.mxu0 0.0
    %1055 = vmatpush1.msra.mxu0 0.0
    %1056 = vmatprep.subr.mxu0 0.0
    %1057 = vmatpush1.msra.mxu0 0.0
    %1058 = vmatprep.subr.mxu0 0.0
    %1059 = vmatpush1.msra.mxu0 0.0
    %1060 = vmatprep.subr.mxu0 0.0
    %1061 = vmatpush1.msra.mxu0 0.0
    %1062 = vmatprep.subr.mxu0 0.0
    %1063 = vmatpush1.msra.mxu0 0.0
    %1064 = vmatprep.subr.mxu0 0.0
    %1065 = vmatpush1.msra.mxu0 0.0
    %1066 = vmatprep.subr.mxu0 0.0
    %1067 = vmatpush1.msra.mxu0 0.0
    %1068 = vmatprep.subr.mxu0 0.0
    %1069 = vmatpush1.msra.mxu0 0.0
    %1070 = vmatprep.subr.mxu0 0.0
    %1071 = vmatpush1.msra.mxu0 0.0
    %1072 = vmatprep.subr.mxu0 0.0
    %1073 = vmatpush1.msra.mxu0 0.0
    %1074 = vmatprep.subr.mxu0 0.0
    %1075 = vmatpush1.msra.mxu0 0.0
    %1076 = vmatprep.subr.mxu0 0.0
    %1077 = vmatpush1.msra.mxu0 0.0
    %1078 = vmatprep.subr.mxu0 0.0
    %1079 = vmatpush1.msra.mxu0 0.0
    %1080 = vmatprep.subr.mxu0 0.0
    %1081 = vmatpush1.msra.mxu0 0.0
    %1082 = vmatprep.subr.mxu0 0.0
    %1083 = vmatpush1.msra.mxu0 0.0
    %1084 = vmatprep.subr.mxu0 0.0
    %1085 = vmatpush1.msra.mxu0 0.0
    %1086 = vmatprep.subr.mxu0 0.0
    %1087 = vmatpush1.msra.mxu0 0.0
    %1088 = vmatprep.subr.mxu0 0.0
    %1089 = vmatpush1.msra.mxu0 0.0
    %1090 = vmatprep.subr.mxu0 0.0
    %1091 = vmatpush1.msra.mxu0 0.0
    %1092 = vmatprep.subr.mxu0 0.0
    %1093 = vmatpush1.msra.mxu0 0.0
    %1094 = vmatprep.subr.mxu0 0.0
    %1095 = vmatpush1.msra.mxu0 0.0
    %1096 = vmatprep.mubr.f32.mxu0 0.0
    %1097 = vmatmul.mubr.f32.gmra.mrb[0].mxu0 %v1030
    %v1098 = vpop.f32.mrb[0].mxu0
    %v1099 = vadd.f32 %v1027, %v1098
    %v1100 = vpop.f32.mrb[0].mxu0
    %1101 = vdwg.mxu0
    %1102 = vrot.lane.b32.xlu0 %v786, 8
    %v1103 = vpop.permute.xlu0 %1102
    %v1105 = vsel %vm441, %v1099, %v1103
    %vm1106 = vcmask 326656
    %v1107 = vsel %vm1106, %v1105, 0.0
    %v1108 = vrot.slane %v175, 5
    %v1111 = vsel %vm177, %v1107, 0
    %1113 = vmatprep.subr.mxu0 0.0
    %1114 = vmatpush1.msra.mxu0 %v133
    %1115 = vmatprep.subr.mxu0 0.0
    %1116 = vmatpush1.msra.mxu0 %v139
    %1117 = vmatprep.subr.mxu0 0.0
    %1118 = vmatpush1.msra.mxu0 %v145
    %1119 = vmatprep.subr.mxu0 0.0
    %1120 = vmatpush1.msra.mxu0 %v151
    %1121 = vmatprep.subr.mxu0 0.0
    %1122 = vmatpush1.msra.mxu0 %v157
    %1123 = vmatprep.subr.mxu0 0.0
    %1124 = vmatpush1.msra.mxu0 %v163
    %1125 = vmatprep.subr.mxu0 0.0
    %1126 = vmatpush1.msra.mxu0 0.0
    %1127 = vmatprep.subr.mxu0 0.0
    %1128 = vmatpush1.msra.mxu0 0.0
    %1129 = vmatprep.subr.mxu0 0.0
    %1130 = vmatpush1.msra.mxu0 0.0
    %1131 = vmatprep.subr.mxu0 0.0
    %1132 = vmatpush1.msra.mxu0 0.0
    %1133 = vmatprep.subr.mxu0 0.0
    %1134 = vmatpush1.msra.mxu0 0.0
    %1135 = vmatprep.subr.mxu0 0.0
    %1136 = vmatpush1.msra.mxu0 0.0
    %1137 = vmatprep.subr.mxu0 0.0
    %1138 = vmatpush1.msra.mxu0 0.0
    %1139 = vmatprep.subr.mxu0 0.0
    %1140 = vmatpush1.msra.mxu0 0.0
    %1141 = vmatprep.subr.mxu0 0.0
    %1142 = vmatpush1.msra.mxu0 0.0
    %1143 = vmatprep.subr.mxu0 0.0
    %1144 = vmatpush1.msra.mxu0 0.0
    %1145 = vmatprep.subr.mxu0 0.0
    %1146 = vmatpush1.msra.mxu0 0.0
    %1147 = vmatprep.subr.mxu0 0.0
    %1148 = vmatpush1.msra.mxu0 0.0
    %1149 = vmatprep.subr.mxu0 0.0
    %1150 = vmatpush1.msra.mxu0 0.0
    %1151 = vmatprep.subr.mxu0 0.0
    %1152 = vmatpush1.msra.mxu0 0.0
    %1153 = vmatprep.subr.mxu0 0.0
    %1154 = vmatpush1.msra.mxu0 0.0
    %1155 = vmatprep.subr.mxu0 0.0
    %1156 = vmatpush1.msra.mxu0 0.0
    %1157 = vmatprep.subr.mxu0 0.0
    %1158 = vmatpush1.msra.mxu0 0.0
    %1159 = vmatprep.subr.mxu0 0.0
    %1160 = vmatpush1.msra.mxu0 0.0
    %1161 = vmatprep.subr.mxu0 0.0
    %1162 = vmatpush1.msra.mxu0 0.0
    %1163 = vmatprep.subr.mxu0 0.0
    %1164 = vmatpush1.msra.mxu0 0.0
    %1165 = vmatprep.subr.mxu0 0.0
    %1166 = vmatpush1.msra.mxu0 0.0
    %1167 = vmatprep.subr.mxu0 0.0
    %1168 = vmatpush1.msra.mxu0 0.0
    %1169 = vmatprep.subr.mxu0 0.0
    %1170 = vmatpush1.msra.mxu0 0.0
    %1171 = vmatprep.subr.mxu0 0.0
    %1172 = vmatpush1.msra.mxu0 0.0
    %1173 = vmatprep.subr.mxu0 0.0
    %1174 = vmatpush1.msra.mxu0 0.0
    %1175 = vmatprep.subr.mxu0 0.0
    %1176 = vmatpush1.msra.mxu0 0.0
    %1177 = vmatprep.mubr.f32.mxu0 0.0
    %1178 = vmatmul.mubr.f32.gmra.mrb[0].mxu0 %v1111
    %v1179 = vpop.f32.mrb[0].mxu0
    %v1180 = vadd.f32 %v1108, %v1179
    %v1181 = vpop.f32.mrb[0].mxu0
    %1182 = vdwg.mxu0
    %v1183 = vmax.f32 %v1180, 0.0
    %1185 = vrot.lane.b32.xlu0 %v1183, 32
    %v1186 = vpop.permute.xlu0 %1185
    %v1188 = vsel %vm262, %v786, %v1186
    %v1189 = vrot.slane %v175, 2
    %v1192 = vsel %vm177, %v1188, 0
    %1194 = vmatprep.subr.mxu0 0.0
    %1195 = vmatpush1.msra.mxu0 %v130
    %1196 = vmatprep.subr.mxu0 0.0
    %1197 = vmatpush1.msra.mxu0 %v136
    %1198 = vmatprep.subr.mxu0 0.0
    %1199 = vmatpush1.msra.mxu0 %v142
    %1200 = vmatprep.subr.mxu0 0.0
    %1201 = vmatpush1.msra.mxu0 %v148
    %1202 = vmatprep.subr.mxu0 0.0
    %1203 = vmatpush1.msra.mxu0 %v154
    %1204 = vmatprep.subr.mxu0 0.0
    %1205 = vmatpush1.msra.mxu0 %v160
    %1206 = vmatprep.subr.mxu0 0.0
    %1207 = vmatpush1.msra.mxu0 0.0
    %1208 = vmatprep.subr.mxu0 0.0
    %1209 = vmatpush1.msra.mxu0 0.0
    %1210 = vmatprep.subr.mxu0 0.0
    %1211 = vmatpush1.msra.mxu0 0.0
    %1212 = vmatprep.subr.mxu0 0.0
    %1213 = vmatpush1.msra.mxu0 0.0
    %1214 = vmatprep.subr.mxu0 0.0
    %1215 = vmatpush1.msra.mxu0 0.0
    %1216 = vmatprep.subr.mxu0 0.0
    %1217 = vmatpush1.msra.mxu0 0.0
    %1218 = vmatprep.subr.mxu0 0.0
    %1219 = vmatpush1.msra.mxu0 0.0
    %1220 = vmatprep.subr.mxu0 0.0
    %1221 = vmatpush1.msra.mxu0 0.0
    %1222 = vmatprep.subr.mxu0 0.0
    %1223 = vmatpush1.msra.mxu0 0.0
    %1224 = vmatprep.subr.mxu0 0.0
    %1225 = vmatpush1.msra.mxu0 0.0
    %1226 = vmatprep.subr.mxu0 0.0
    %1227 = vmatpush1.msra.mxu0 0.0
    %1228 = vmatprep.subr.mxu0 0.0
    %1229 = vmatpush1.msra.mxu0 0.0
    %1230 = vmatprep.subr.mxu0 0.0
    %1231 = vmatpush1.msra.mxu0 0.0
    %1232 = vmatprep.subr.mxu0 0.0
    %1233 = vmatpush1.msra.mxu0 0.0
    %1234 = vmatprep.subr.mxu0 0.0
    %1235 = vmatpush1.msra.mxu0 0.0
    %1236 = vmatprep.subr.mxu0 0.0
    %1237 = vmatpush1.msra.mxu0 0.0
    %1238 = vmatprep.subr.mxu0 0.0
    %1239 = vmatpush1.msra.mxu0 0.0
    %1240 = vmatprep.subr.mxu0 0.0
    %1241 = vmatpush1.msra.mxu0 0.0
    %1242 = vmatprep.subr.mxu0 0.0
    %1243 = vmatpush1.msra.mxu0 0.0
    %1244 = vmatprep.subr.mxu0 0.0
    %1245 = vmatpush1.msra.mxu0 0.0
    %1246 = vmatprep.subr.mxu0 0.0
    %1247 = vmatpush1.msra.mxu0 0.0
    %1248 = vmatprep.subr.mxu0 0.0
    %1249 = vmatpush1.msra.mxu0 0.0
    %1250 = vmatprep.subr.mxu0 0.0
    %1251 = vmatpush1.msra.mxu0 0.0
    %1252 = vmatprep.subr.mxu0 0.0
    %1253 = vmatpush1.msra.mxu0 0.0
    %1254 = vmatprep.subr.mxu0 0.0
    %1255 = vmatpush1.msra.mxu0 0.0
    %1256 = vmatprep.subr.mxu0 0.0
    %1257 = vmatpush1.msra.mxu0 0.0
    %1258 = vmatprep.mubr.f32.mxu0 0.0
    %1259 = vmatmul.mubr.f32.gmra.mrb[0].mxu0 %v1192
    %v1260 = vpop.f32.mrb[0].mxu0
    %v1261 = vadd.f32 %v1189, %v1260
    %v1262 = vpop.f32.mrb[0].mxu0
    %1263 = vdwg.mxu0
    %v1265 = vsel %vm262, %v1261, 0
    %v1268 = vsel %vm262, %v261, 0
    %1270 = vmatprep.subr.mxu0 0.0
    %1271 = vmatpush1.xpose.msra.mxu0 %v1268
    %1272 = vmatprep.subr.mxu0 0.0
    %1273 = vmatpush1.xpose.msra.mxu0 0.0
    %1274 = vmatprep.subr.mxu0 0.0
    %1275 = vmatpush1.xpose.msra.mxu0 0.0
    %1276 = vmatprep.subr.mxu0 0.0
    %1277 = vmatpush1.xpose.msra.mxu0 0.0
    %1278 = vmatprep.subr.mxu0 0.0
    %1279 = vmatpush1.xpose.msra.mxu0 0.0
    %1280 = vmatprep.subr.mxu0 0.0
    %1281 = vmatpush1.xpose.msra.mxu0 0.0
    %1282 = vmatprep.subr.mxu0 0.0
    %1283 = vmatpush1.xpose.msra.mxu0 0.0
    %1284 = vmatprep.subr.mxu0 0.0
    %1285 = vmatpush1.xpose.msra.mxu0 0.0
    %1286 = vmatprep.subr.mxu0 0.0
    %1287 = vmatpush1.xpose.msra.mxu0 0.0
    %1288 = vmatprep.subr.mxu0 0.0
    %1289 = vmatpush1.xpose.msra.mxu0 0.0
    %1290 = vmatprep.subr.mxu0 0.0
    %1291 = vmatpush1.xpose.msra.mxu0 0.0
    %1292 = vmatprep.subr.mxu0 0.0
    %1293 = vmatpush1.xpose.msra.mxu0 0.0
    %1294 = vmatprep.subr.mxu0 0.0
    %1295 = vmatpush1.xpose.msra.mxu0 0.0
    %1296 = vmatprep.subr.mxu0 0.0
    %1297 = vmatpush1.xpose.msra.mxu0 0.0
    %1298 = vmatprep.subr.mxu0 0.0
    %1299 = vmatpush1.xpose.msra.mxu0 0.0
    %1300 = vmatprep.subr.mxu0 0.0
    %1301 = vmatpush1.xpose.msra.mxu0 0.0
    %1302 = vmatprep.subr.mxu0 0.0
    %1303 = vmatpush1.xpose.msra.mxu0 0.0
    %1304 = vmatprep.subr.mxu0 0.0
    %1305 = vmatpush1.xpose.msra.mxu0 0.0
    %1306 = vmatprep.subr.mxu0 0.0
    %1307 = vmatpush1.xpose.msra.mxu0 0.0
    %1308 = vmatprep.subr.mxu0 0.0
    %1309 = vmatpush1.xpose.msra.mxu0 0.0
    %1310 = vmatprep.subr.mxu0 0.0
    %1311 = vmatpush1.xpose.msra.mxu0 0.0
    %1312 = vmatprep.subr.mxu0 0.0
    %1313 = vmatpush1.xpose.msra.mxu0 0.0
    %1314 = vmatprep.subr.mxu0 0.0
    %1315 = vmatpush1.xpose.msra.mxu0 0.0
    %1316 = vmatprep.subr.mxu0 0.0
    %1317 = vmatpush1.xpose.msra.mxu0 0.0
    %1318 = vmatprep.subr.mxu0 0.0
    %1319 = vmatpush1.xpose.msra.mxu0 0.0
    %1320 = vmatprep.subr.mxu0 0.0
    %1321 = vmatpush1.xpose.msra.mxu0 0.0
    %1322 = vmatprep.subr.mxu0 0.0
    %1323 = vmatpush1.xpose.msra.mxu0 0.0
    %1324 = vmatprep.subr.mxu0 0.0
    %1325 = vmatpush1.xpose.msra.mxu0 0.0
    %1326 = vmatprep.subr.mxu0 0.0
    %1327 = vmatpush1.xpose.msra.mxu0 0.0
    %1328 = vmatprep.subr.mxu0 0.0
    %1329 = vmatpush1.xpose.msra.mxu0 0.0
    %1330 = vmatprep.subr.mxu0 0.0
    %1331 = vmatpush1.xpose.msra.mxu0 0.0
    %1332 = vmatprep.subr.mxu0 0.0
    %1333 = vmatpush1.xpose.msra.mxu0 0.0
    %1334 = vmatprep.mubr.f32.mxu0 0.0
    %1335 = vmatmul.mubr.f32.gmra.mrb[0].mxu0 %v1265
    %v1336 = vpop.f32.mrb[0].mxu0
    %v1337 = vadd.f32 0.0, %v1336
    %v1338 = vpop.f32.mrb[0].mxu0
    %1339 = vdwg.mxu0
    %v1340 = vsel %vm936, %v1337, -inf
    %1341 = vmax.xlane.f32.xlu0 %v1340
    %v1342 = vpop.xlane.xlu0 %1341
    %v1343 = vsub.f32 %v1337, %v1342
    %v1344 = vmul.f32 %v1343, 1.442695
    %v1345 = vpow.pop %v1344
    %v1346 = vsel %vm936, %v1345, 0.0
    %1347 = vadd.xlane.f32.xlu0 %v1346
    %v1348 = vpop.xlane.xlu0 %1347
    %v1349 = vrcp.pop %v1348
    %v1350 = vmul.f32 %v1345, %v1349
    %1351 = vrot.lane.b32.xlu0 %v261, 96
    %v1352 = vpop.permute.xlu0 %1351
    %v1354 = vsel %vm950, %v1350, 0
    %v1356 = vsel %vm103, %v1352, 0
    %1358 = vmatprep.subr.mxu0 0.0
    %1359 = vmatpush1.msra.mxu0 %v1356
    %1360 = vmatprep.subr.mxu0 0.0
    %1361 = vmatpush1.msra.mxu0 0.0
    %1362 = vmatprep.subr.mxu0 0.0
    %1363 = vmatpush1.msra.mxu0 0.0
    %1364 = vmatprep.subr.mxu0 0.0
    %1365 = vmatpush1.msra.mxu0 0.0
    %1366 = vmatprep.subr.mxu0 0.0
    %1367 = vmatpush1.msra.mxu0 0.0
    %1368 = vmatprep.subr.mxu0 0.0
    %1369 = vmatpush1.msra.mxu0 0.0
    %1370 = vmatprep.subr.mxu0 0.0
    %1371 = vmatpush1.msra.mxu0 0.0
    %1372 = vmatprep.subr.mxu0 0.0
    %1373 = vmatpush1.msra.mxu0 0.0
    %1374 = vmatprep.subr.mxu0 0.0
    %1375 = vmatpush1.msra.mxu0 0.0
    %1376 = vmatprep.subr.mxu0 0.0
    %1377 = vmatpush1.msra.mxu0 0.0
    %1378 = vmatprep.subr.mxu0 0.0
    %1379 = vmatpush1.msra.mxu0 0.0
    %1380 = vmatprep.subr.mxu0 0.0
    %1381 = vmatpush1.msra.mxu0 0.0
    %1382 = vmatprep.subr.mxu0 0.0
    %1383 = vmatpush1.msra.mxu0 0.0
    %1384 = vmatprep.subr.mxu0 0.0
    %1385 = vmatpush1.msra.mxu0 0.0
    %1386 = vmatprep.subr.mxu0 0.0
    %1387 = vmatpush1.msra.mxu0 0.0
    %1388 = vmatprep.subr.mxu0 0.0
    %1389 = vmatpush1.msra.mxu0 0.0
    %1390 = vmatprep.subr.mxu0 0.0
    %1391 = vmatpush1.msra.mxu0 0.0
    %1392 = vmatprep.subr.mxu0 0.0
    %1393 = vmatpush1.msra.mxu0 0.0
    %1394 = vmatprep.subr.mxu0 0.0
    %1395 = vmatpush1.msra.mxu0 0.0
    %1396 = vmatprep.subr.mxu0 0.0
    %1397 = vmatpush1.msra.mxu0 0.0
    %1398 = vmatprep.subr.mxu0 0.0
    %1399 = vmatpush1.msra.mxu0 0.0
    %1400 = vmatprep.subr.mxu0 0.0
    %1401 = vmatpush1.msra.mxu0 0.0
    %1402 = vmatprep.subr.mxu0 0.0
    %1403 = vmatpush1.msra.mxu0 0.0
    %1404 = vmatprep.subr.mxu0 0.0
    %1405 = vmatpush1.msra.mxu0 0.0
    %1406 = vmatprep.subr.mxu0 0.0
    %1407 = vmatpush1.msra.mxu0 0.0
    %1408 = vmatprep.subr.mxu0 0.0
    %1409 = vmatpush1.msra.mxu0 0.0
    %1410 = vmatprep.subr.mxu0 0.0
    %1411 = vmatpush1.msra.mxu0 0.0
    %1412 = vmatprep.subr.mxu0 0.0
    %1413 = vmatpush1.msra.mxu0 0.0
    %1414 = vmatprep.subr.mxu0 0.0
    %1415 = vmatpush1.msra.mxu0 0.0
    %1416 = vmatprep.subr.mxu0 0.0
    %1417 = vmatpush1.msra.mxu0 0.0
    %1418 = vmatprep.subr.mxu0 0.0
    %1419 = vmatpush1.msra.mxu0 0.0
    %1420 = vmatprep.subr.mxu0 0.0
    %1421 = vmatpush1.msra.mxu0 0.0
    %1422 = vmatprep.mubr.f32.mxu0 0.0
    %1423 = vmatmul.mubr.f32.gmra.mrb[0].mxu0 %v1354
    %v1424 = vpop.f32.mrb[0].mxu0
    %v1425 = vadd.f32 0.0, %v1424
    %v1426 = vpop.f32.mrb[0].mxu0
    %1427 = vdwg.mxu0
    %v1429 = vsel %vm177, %v1425, 0
    %1431 = vmatprep.subr.mxu0 0.0
    %1432 = vmatpush1.msra.mxu0 %v132
    %1433 = vmatprep.subr.mxu0 0.0
    %1434 = vmatpush1.msra.mxu0 %v138
    %1435 = vmatprep.subr.mxu0 0.0
    %1436 = vmatpush1.msra.mxu0 %v144
    %1437 = vmatprep.subr.mxu0 0.0
    %1438 = vmatpush1.msra.mxu0 %v150
    %1439 = vmatprep.subr.mxu0 0.0
    %1440 = vmatpush1.msra.mxu0 %v156
    %1441 = vmatprep.subr.mxu0 0.0
    %1442 = vmatpush1.msra.mxu0 %v162
    %1443 = vmatprep.subr.mxu0 0.0
    %1444 = vmatpush1.msra.mxu0 0.0
    %1445 = vmatprep.subr.mxu0 0.0
    %1446 = vmatpush1.msra.mxu0 0.0
    %1447 = vmatprep.subr.mxu0 0.0
    %1448 = vmatpush1.msra.mxu0 0.0
    %1449 = vmatprep.subr.mxu0 0.0
    %1450 = vmatpush1.msra.mxu0 0.0
    %1451 = vmatprep.subr.mxu0 0.0
    %1452 = vmatpush1.msra.mxu0 0.0
    %1453 = vmatprep.subr.mxu0 0.0
    %1454 = vmatpush1.msra.mxu0 0.0
    %1455 = vmatprep.subr.mxu0 0.0
    %1456 = vmatpush1.msra.mxu0 0.0
    %1457 = vmatprep.subr.mxu0 0.0
    %1458 = vmatpush1.msra.mxu0 0.0
    %1459 = vmatprep.subr.mxu0 0.0
    %1460 = vmatpush1.msra.mxu0 0.0
    %1461 = vmatprep.subr.mxu0 0.0
    %1462 = vmatpush1.msra.mxu0 0.0
    %1463 = vmatprep.subr.mxu0 0.0
    %1464 = vmatpush1.msra.mxu0 0.0
    %1465 = vmatprep.subr.mxu0 0.0
    %1466 = vmatpush1.msra.mxu0 0.0
    %1467 = vmatprep.subr.mxu0 0.0
    %1468 = vmatpush1.msra.mxu0 0.0
    %1469 = vmatprep.subr.mxu0 0.0
    %1470 = vmatpush1.msra.mxu0 0.0
    %1471 = vmatprep.subr.mxu0 0.0
    %1472 = vmatpush1.msra.mxu0 0.0
    %1473 = vmatprep.subr.mxu0 0.0
    %1474 = vmatpush1.msra.mxu0 0.0
    %1475 = vmatprep.subr.mxu0 0.0
    %1476 = vmatpush1.msra.mxu0 0.0
    %1477 = vmatprep.subr.mxu0 0.0
    %1478 = vmatpush1.msra.mxu0 0.0
    %1479 = vmatprep.subr.mxu0 0.0
    %1480 = vmatpush1.msra.mxu0 0.0
    %1481 = vmatprep.subr.mxu0 0.0
    %1482 = vmatpush1.msra.mxu0 0.0
    %1483 = vmatprep.subr.mxu0 0.0
    %1484 = vmatpush1.msra.mxu0 0.0
    %1485 = vmatprep.subr.mxu0 0.0
    %1486 = vmatpush1.msra.mxu0 0.0
    %1487 = vmatprep.subr.mxu0 0.0
    %1488 = vmatpush1.msra.mxu0 0.0
    %1489 = vmatprep.subr.mxu0 0.0
    %1490 = vmatpush1.msra.mxu0 0.0
    %1491 = vmatprep.subr.mxu0 0.0
    %1492 = vmatpush1.msra.mxu0 0.0
    %1493 = vmatprep.subr.mxu0 0.0
    %1494 = vmatpush1.msra.mxu0 0.0
    %1495 = vmatprep.mubr.f32.mxu0 0.0
    %1496 = vmatmul.mubr.f32.gmra.mrb[0].mxu0 %v1429
    %v1497 = vpop.f32.mrb[0].mxu0
    %v1498 = vadd.f32 0.0, %v1497
    %v1499 = vpop.f32.mrb[0].mxu0
    %1500 = vdwg.mxu0
    %v1501 = vrot.slane %v175, 7
    %v1503 = vadd.f32 %v1498, %v1501
    %1505 = vrot.lane.b32.xlu0 %v176, 4
    %v1506 = vpop.permute.xlu0 %1505
    %v1508 = vadd.f32 %v1498, %v1506
    %v1509 = vmax.f32 %v1508, 0.0
    %v1511 = vrot.slane %v1509, 7
    %1512 = vrot.lane.b32.xlu0 %v1511, 124
    %v1513 = vpop.permute.xlu0 %1512
    %v1515 = vsel %vm95, %v1183, %v1513
    %vm1516 = vcmask 130048
    %v1518 = vsel %vm1516, %v1515, 0
    %1520 = vmatprep.subr.mxu0 0.0
    %1521 = vmatpush1.msra.mxu0 %v172
    %1522 = vmatprep.subr.mxu0 0.0
    %1523 = vmatpush1.msra.mxu0 %v173
    %1524 = vmatprep.subr.mxu0 0.0
    %1525 = vmatpush1.msra.mxu0 0.0
    %1526 = vmatprep.subr.mxu0 0.0
    %1527 = vmatpush1.msra.mxu0 0.0
    %1528 = vmatprep.subr.mxu0 0.0
    %1529 = vmatpush1.msra.mxu0 0.0
    %1530 = vmatprep.subr.mxu0 0.0
    %1531 = vmatpush1.msra.mxu0 0.0
    %1532 = vmatprep.subr.mxu0 0.0
    %1533 = vmatpush1.msra.mxu0 0.0
    %1534 = vmatprep.subr.mxu0 0.0
    %1535 = vmatpush1.msra.mxu0 0.0
    %1536 = vmatprep.subr.mxu0 0.0
    %1537 = vmatpush1.msra.mxu0 0.0
    %1538 = vmatprep.subr.mxu0 0.0
    %1539 = vmatpush1.msra.mxu0 0.0
    %1540 = vmatprep.subr.mxu0 0.0
    %1541 = vmatpush1.msra.mxu0 0.0
    %1542 = vmatprep.subr.mxu0 0.0
    %1543 = vmatpush1.msra.mxu0 0.0
    %1544 = vmatprep.subr.mxu0 0.0
    %1545 = vmatpush1.msra.mxu0 0.0
    %1546 = vmatprep.subr.mxu0 0.0
    %1547 = vmatpush1.msra.mxu0 0.0
    %1548 = vmatprep.subr.mxu0 0.0
    %1549 = vmatpush1.msra.mxu0 0.0
    %1550 = vmatprep.subr.mxu0 0.0
    %1551 = vmatpush1.msra.mxu0 0.0
    %1552 = vmatprep.subr.mxu0 0.0
    %1553 = vmatpush1.msra.mxu0 0.0
    %1554 = vmatprep.subr.mxu0 0.0
    %1555 = vmatpush1.msra.mxu0 0.0
    %1556 = vmatprep.subr.mxu0 0.0
    %1557 = vmatpush1.msra.mxu0 0.0
    %1558 = vmatprep.subr.mxu0 0.0
    %1559 = vmatpush1.msra.mxu0 0.0
    %1560 = vmatprep.subr.mxu0 0.0
    %1561 = vmatpush1.msra.mxu0 0.0
    %1562 = vmatprep.subr.mxu0 0.0
    %1563 = vmatpush1.msra.mxu0 0.0
    %1564 = vmatprep.subr.mxu0 0.0
    %1565 = vmatpush1.msra.mxu0 0.0
    %1566 = vmatprep.subr.mxu0 0.0
    %1567 = vmatpush1.msra.mxu0 0.0
    %1568 = vmatprep.subr.mxu0 0.0
    %1569 = vmatpush1.msra.mxu0 0.0
    %1570 = vmatprep.subr.mxu0 0.0
    %1571 = vmatpush1.msra.mxu0 0.0
    %1572 = vmatprep.subr.mxu0 0.0
    %1573 = vmatpush1.msra.mxu0 0.0
    %1574 = vmatprep.subr.mxu0 0.0
    %1575 = vmatpush1.msra.mxu0 0.0
    %1576 = vmatprep.subr.mxu0 0.0
    %1577 = vmatpush1.msra.mxu0 0.0
    %1578 = vmatprep.subr.mxu0 0.0
    %1579 = vmatpush1.msra.mxu0 0.0
    %1580 = vmatprep.subr.mxu0 0.0
    %1581 = vmatpush1.msra.mxu0 0.0
    %1582 = vmatprep.subr.mxu0 0.0
    %1583 = vmatpush1.msra.mxu0 0.0
    %1584 = vmatprep.mubr.f32.mxu0 0.0
    %1585 = vmatmul.mubr.f32.gmra.mrb[0].mxu0 %v1518
    %v1586 = vpop.f32.mrb[0].mxu0
    %v1587 = vadd.f32 0.0, %v1586
    %v1588 = vpop.f32.mrb[0].mxu0
    %1589 = vdwg.mxu0
    %v1590 = vrot.slane %v175, 6
    %v1592 = vadd.f32 %v1587, %v1590
    %1593 = vrot.lane.b32.xlu0 %v176, 6
    %v1594 = vpop.permute.xlu0 %1593
    %v1596 = vadd.f32 %v1587, %v1594
    %vm1597 = vcmask 48128
    %v1598 = vsel %vm1597, %v1592, 0.0
    %v1599 = vsel %vm1516, %v1183, 0.0
    %1601 = vrot.lane.b32.xlu0 %v1596, 122
    %v1602 = vpop.permute.xlu0 %1601
    %v1604 = vsel %vm1597, %v1602, 0.0
    %1605 = vrot.lane.b32.xlu0 %v1509, 124
    %v1606 = vpop.permute.xlu0 %1605
    %v1608 = vsel %vm1516, %v1606, 0.0
    %vm1609 = vcmask 31744
    %v1610 = vsel %vm1609, %v1503, 0.0
    %v1611 = vsel %vm262, %v786, 0.0
    %v1613 = vrot.slane %v1599, 7
    %v1616 = vrot.slane %v1604, 7
    %v1619 = vrot.slane %v1608, 5
    %v1622 = vrot.slane %v1610, 4
    %v1625 = vrot.slane %v1611, 3
    %v1627 = vsel %vm95, %v1598, %v1613
    %v1628 = vsel %vm97, %v1627, %v1616
    %v1629 = vsel %vm99, %v1628, %v1619
    %v1630 = vsel %vm101, %v1629, %v1622
    %v1631 = vsel %vm103, %v1630, %v1625
    %v1632 = vsel %vm105, %v1631, 0.0
    %1633 = vst [vmem:[%s9] sm:$0xff] %v1632
    // Predicated region
    $region38: #{control_module_forward.1} parent=1 // pred_check
      _
    $region39: #{control_module_forward.1} parent=1 // pred_check_branch
      %1635 = sbr.rel (0) target = $region41
    $region40: #{control_module_forward.1} parent=1 // pred_region
      _
    $region41: #{control_module_forward.1} parent=1 // pred_fallthru
      _
    // Predicated region
    $region42: #{control_module_forward.1} parent=1 // pred_check
      _
    $region43: #{control_module_forward.1} parent=1 // pred_check_branch
      %1637 = sbr.rel (0) target = $region45
    $region44: #{control_module_forward.1} parent=1 // pred_region
      _
    $region45: #{control_module_forward.1} parent=1 // pred_fallthru
      _
    %1638 = vsyncpa [#allocation5], 1

</llo_original>
